<compile_context>
chip_gen: v7x
topology: tpu7x:2x2x1
jax: 0.10.0
libtpu: 0.0.40
codegen_flags: <defaults>
</compile_context>

<pallas_src>
import jax
import jax.numpy as jnp
from jax import lax
from jax.experimental import pallas as pl
from jax.experimental.pallas import tpu as pltpu

FIX_DIM = 512  # self.fix_dim in the PyTorch module


def _round_up(x, m):
    return ((x + m - 1) // m) * m


def dkt_kernel(xemb_ref, qlog_ref,
               wih_ref, bias_ref, whh_ref, wout_ref,
               y_ref,
               pg_s, h_s, h_c, c_c):
    """One (batch tile, time chunk) grid step.

    xemb_ref : (Tc, Bt, Ep) bf16  interaction embeddings (already 512->E folded)
    qlog_ref : (Tc, Bt)     f32   precomputed question logit  qemb@w_out + b_out
    wih_ref  : (Ep, 4Ep)    bf16  LSTM weight_ih_l0.T  (gate order i, f, g, o)
    bias_ref : (1, 4Ep)     f32   b_ih + b_hh (pre-summed, gate-block padded)
    whh_ref  : (Ep, 4Ep)    bf16  LSTM weight_hh_l0.T
    wout_ref : (1, Ep)      f32   out_layer weight (row vector, zero-padded)
    y_ref    : (Tc, Bt)     f32   output probabilities (lane-dense)
    pg_s     : (Tc, Bt, 4Ep) f32  hoisted input projection scratch
    h_s      : (Tc, Bt, Ep)  f32  per-step hidden states of this chunk
    h_c, c_c : (Bt, Ep)      f32  LSTM state carried across time chunks
    """
    Tc, Bt, Ep = xemb_ref.shape

    # Re-init carried state at the start of each batch tile's sequence.
    @pl.when(pl.program_id(1) == 0)
    def _():
        h_c[...] = jnp.zeros_like(h_c)
        c_c[...] = jnp.zeros_like(c_c)

    # Hoisted input-side projection: one big bf16 MXU matmul for the chunk.
    x2d = xemb_ref[...].reshape(Tc * Bt, Ep)
    pg = jnp.dot(x2d, wih_ref[...], preferred_element_type=jnp.float32)
    pg_s[...] = (pg + bias_ref[...]).reshape(Tc, Bt, 4 * Ep)

    w_hh = whh_ref[...]  # (Ep, 4Ep) bf16, hoisted out of the recurrence

    # --- LSTM recurrence, PyTorch gate order [i, f, g, o] ---
    def step(t, carry):
        h, c = carry
        gates = pg_s[t] + jnp.dot(h.astype(jnp.bfloat16), w_hh,
                                  preferred_element_type=jnp.float32)
        i_g = jax.nn.sigmoid(gates[:, 0:Ep])
        f_g = jax.nn.sigmoid(gates[:, Ep:2 * Ep])
        g_g = jnp.tanh(gates[:, 2 * Ep:3 * Ep])
        o_g = jax.nn.sigmoid(gates[:, 3 * Ep:4 * Ep])
        c_new = f_g * c + i_g * g_g
        h_new = o_g * jnp.tanh(c_new)
        h_s[t] = h_new
        return (h_new, c_new)

    h_fin, c_fin = lax.fori_loop(0, Tc, step, (h_c[...], c_c[...]),
                                 unroll=min(8, Tc))
    h_c[...] = h_fin
    c_c[...] = c_fin

    # Output head for the whole chunk (dropout = identity in eval mode):
    #   y = sigmoid(h . w_out + (qemb . w_out + b_out))
    w_out = wout_ref[...]                                        # (1, Ep)
    logits = jnp.sum(h_s[...] * w_out[None, :, :], axis=2)       # (Tc, Bt)
    y_ref[...] = jax.nn.sigmoid(logits + qlog_ref[...])


def dkt_forward(q, r, cshft, params, *, b_tile=None, t_chunk=None):
    """q, r, cshft: int32 (B, L). Returns float32 (B, L)."""
    interaction_tab = params["interaction_emb"]          # (2*num_c, 512)
    question_tab = params["question_emb"]                # (num_c, E)
    num_c, E = question_tab.shape
    B, L = q.shape

    Ep = _round_up(E, 128)

    # ---- exact wrapper-side rewrites -------------------------------------
    # Fold Linear(512->E) into the embedding table; bf16 for the MXU.
    proj_tab = interaction_tab @ params["w_emb"] + params["b_emb"]     # (2*num_c, E)
    proj_tab = jnp.pad(proj_tab, ((0, 0), (0, Ep - E))).astype(jnp.bfloat16)

    # question_emb only ever feeds Linear(E->1):
    #   (h + qemb) @ w_out + b_out == h @ w_out + (qemb @ w_out + b_out)
    q_logit_tab = (question_tab @ params["w_out"] + params["b_out"]).reshape(num_c)

    # Pad each gate block to Ep lanes (zero-filled -> numerically identical).
    def pad_gate_cols(w):
        parts = [w[..., k * E:(k + 1) * E] for k in range(4)]
        pads = [(0, 0)] * (w.ndim - 1) + [(0, Ep - E)]
        return jnp.concatenate([jnp.pad(p, pads) for p in parts], axis=-1)

    w_ih = pad_gate_cols(jnp.pad(params["w_ih"], ((0, Ep - E), (0, 0)))).astype(jnp.bfloat16)
    w_hh = pad_gate_cols(jnp.pad(params["w_hh"], ((0, Ep - E), (0, 0)))).astype(jnp.bfloat16)
    bias = pad_gate_cols(params["b_ih"] + params["b_hh"])               # (1, 4Ep) f32
    w_out_row = jnp.pad(params["w_out"].reshape(1, E), ((0, 0), (0, Ep - E)))  # (1, Ep)

    # ---- batch / time tiling ----------------------------------------------
    # Lane-dense 128-wide batch tiles when B > 128 (>=2 "parallel" iterations
    # -> both v7x TensorCores busy); otherwise one full tile (== full lane dim).
    if b_tile is None:
        b_tile = 128 if B > 128 else _round_up(max(B, 1), 8)
    n_b = pl.cdiv(B, b_tile)
    B_pad = n_b * b_tile

    if t_chunk is None:
        t_chunk = min(32, _round_up(L, 8))   # bounds VMEM independent of L
    n_t = pl.cdiv(L, t_chunk)
    L_pad = n_t * t_chunk

    pads = ((0, B_pad - B), (0, L_pad - L))
    q_p = jnp.pad(q, pads)
    r_p = jnp.pad(r, pads)
    c_p = jnp.pad(cshft, pads)

    # Time-major gathers of per-token data (transpose tiny index arrays only).
    x_tok_t = (q_p + num_c * r_p).T                       # (L_pad, B_pad)
    xemb_t = jnp.take(proj_tab, x_tok_t, axis=0)          # (L_pad, B_pad, Ep) bf16
    qlog_t = jnp.take(q_logit_tab, c_p.T, axis=0)         # (L_pad, B_pad) f32

    y_t = pl.pallas_call(
        dkt_kernel,
        out_shape=jax.ShapeDtypeStruct((L_pad, B_pad), jnp.float32),
        grid_spec=pltpu.PrefetchScalarGridSpec(
            num_scalar_prefetch=0,
            grid=(n_b, n_t),
            in_specs=[
                pl.BlockSpec((t_chunk, b_tile, Ep), lambda b, t: (t, b, 0)),   # xemb
                pl.BlockSpec((t_chunk, b_tile), lambda b, t: (t, b)),          # q_logit
                pl.BlockSpec((Ep, 4 * Ep), lambda b, t: (0, 0)),               # w_ih
                pl.BlockSpec((1, 4 * Ep), lambda b, t: (0, 0)),                # bias
                pl.BlockSpec((Ep, 4 * Ep), lambda b, t: (0, 0)),               # w_hh
                pl.BlockSpec((1, Ep), lambda b, t: (0, 0)),                    # w_out
            ],
            out_specs=pl.BlockSpec((t_chunk, b_tile), lambda b, t: (t, b)),
            scratch_shapes=[
                pltpu.VMEM((t_chunk, b_tile, 4 * Ep), jnp.float32),  # pg_s
                pltpu.VMEM((t_chunk, b_tile, Ep), jnp.float32),      # h_s
                pltpu.VMEM((b_tile, Ep), jnp.float32),               # h carry
                pltpu.VMEM((b_tile, Ep), jnp.float32),               # c carry
            ],
        ),
        compiler_params=pltpu.CompilerParams(
            dimension_semantics=("parallel", "arbitrary"),
            vmem_limit_bytes=32 * 1024 * 1024,
        ),
    )(xemb_t, qlog_t, w_ih, bias, w_hh, w_out_row)

    return y_t[:L, :B].T                                   # (B, L)


def init_params(key, num_c, emb_size, fix_dim=FIX_DIM):
    """Deterministic synthetic init matching DKT.__init__ shapes (emb_type='qid')."""
    E = emb_size
    ks = jax.random.split(key, 10)
    p = {
        # Embedding(num_c*2, 512)
        "interaction_emb": 0.02 * jax.random.normal(ks[0], (num_c * 2, fix_dim), jnp.float32),
        # Embedding(num_c, E)
        "question_emb": 0.02 * jax.random.normal(ks[1], (num_c, E), jnp.float32),
        # Linear(512, E): stored transposed (in, out)
        "w_emb": 0.02 * jax.random.normal(ks[2], (fix_dim, E), jnp.float32),
        "b_emb": 0.02 * jax.random.normal(ks[3], (1, E), jnp.float32),
        # LSTM(E, E): weight_ih_l0.T / weight_hh_l0.T, gates ordered [i, f, g, o]
        "w_ih": 0.1 * jax.random.normal(ks[4], (E, 4 * E), jnp.float32),
        "b_ih": 0.1 * jax.random.normal(ks[5], (1, 4 * E), jnp.float32),
        "w_hh": 0.1 * jax.random.normal(ks[6], (E, 4 * E), jnp.float32),
        "b_hh": 0.1 * jax.random.normal(ks[7], (1, 4 * E), jnp.float32),
        # Linear(E, 1): stored transposed
        "w_out": 0.1 * jax.random.normal(ks[8], (E, 1), jnp.float32),
        "b_out": 0.1 * jax.random.normal(ks[9], (1, 1), jnp.float32),
    }
    return p


def dkt_ref(q, r, cshft, p):
    """Pure-JAX f32 reference of the original (unfolded) forward pass."""
    num_c, E = p["question_emb"].shape
    B, L = q.shape
    x_tok = q + num_c * r
    xemb = p["interaction_emb"][x_tok] @ p["w_emb"] + p["b_emb"]   # (B, L, E)

    def step(carry, xt):
        h, c = carry
        g = xt @ p["w_ih"] + p["b_ih"] + h @ p["w_hh"] + p["b_hh"]
        i = jax.nn.sigmoid(g[:, :E])
        f = jax.nn.sigmoid(g[:, E:2 * E])
        gg = jnp.tanh(g[:, 2 * E:3 * E])
        o = jax.nn.sigmoid(g[:, 3 * E:])
        c = f * c + i * gg
        h = o * jnp.tanh(c)
        return (h, c), h

    (_, _), hs = lax.scan(step,
                          (jnp.zeros((B, E), jnp.float32), jnp.zeros((B, E), jnp.float32)),
                          jnp.transpose(xemb, (1, 0, 2)))
    hs = jnp.transpose(hs, (1, 0, 2))                              # (B, L, E)
    h = hs + p["question_emb"][cshft]
    y = jax.nn.sigmoid(h @ p["w_out"] + p["b_out"])
    return y[..., 0]


if __name__ == "__main__":
    num_c = 10      # number of concepts
    emb_size = 32   # emb_size == hidden_size
    B, L = 2, 8     # batch, sequence length

    key = jax.random.PRNGKey(0)
    kp, kq, kr, kc = jax.random.split(key, 4)
    params = init_params(kp, num_c, emb_size)

    q = jax.random.randint(kq, (B, L), 0, num_c, dtype=jnp.int32)
    r = jax.random.randint(kr, (B, L), 0, 2, dtype=jnp.int32)
    cshft = jax.random.randint(kc, (B, L), 0, num_c, dtype=jnp.int32)
    # `diff` is unused on the emb_type='qid' path.

    y = jax.block_until_ready(dkt_forward(q, r, cshft, params))
    y_ref = jax.block_until_ready(dkt_ref(q, r, cshft, params))

    assert y.shape == (B, L)
    # bf16 activations/weights on the MXU path -> slightly loosened tolerance.
    assert jnp.allclose(y, y_ref, atol=1e-2, rtol=1e-2), (y, y_ref)
    print("KERNEL_OK")
</pallas_src>

<mosaic_0001>
module attributes {stable_mosaic.version = 11 : i64} {
  func.func @dkt_kernel(%arg0: i32, %arg1: i32, %arg2: memref<8x8x128xbf16, #tpu.memory_space<vmem>>, %arg3: memref<8x8xf32, #tpu.memory_space<vmem>>, %arg4: memref<128x512xbf16, #tpu.memory_space<vmem>>, %arg5: memref<1x512xf32, #tpu.memory_space<vmem>>, %arg6: memref<128x512xbf16, #tpu.memory_space<vmem>>, %arg7: memref<1x128xf32, #tpu.memory_space<vmem>>, %arg8: memref<8x8xf32, #tpu.memory_space<vmem>>, %arg9: memref<8x8x512xf32, #tpu.memory_space<vmem>>, %arg10: memref<8x8x128xf32, #tpu.memory_space<vmem>>, %arg11: memref<8x128xf32, #tpu.memory_space<vmem>>, %arg12: memref<8x128xf32, #tpu.memory_space<vmem>>) attributes {dimension_semantics = [#tpu.dimension_semantics<parallel>, #tpu.dimension_semantics<arbitrary>], iteration_bounds = array<i64: 1, 1>, scalar_prefetch = 0 : i64, scratch_operands = 4 : i64, tpu.core_type = #tpu.core_type<tc>, window_params = [{transform_indices = @transform_0, window_bounds = array<i64: 8, 8, 128>}, {transform_indices = @transform_1, window_bounds = array<i64: 8, 8>}, {pipeline_mode = #tpu.pipeline_mode<synchronous>, transform_indices = @transform_2, window_bounds = array<i64: 128, 512>}, {pipeline_mode = #tpu.pipeline_mode<synchronous>, transform_indices = @transform_3, window_bounds = array<i64: 1, 512>}, {pipeline_mode = #tpu.pipeline_mode<synchronous>, transform_indices = @transform_4, window_bounds = array<i64: 128, 512>}, {pipeline_mode = #tpu.pipeline_mode<synchronous>, transform_indices = @transform_5, window_bounds = array<i64: 1, 128>}, {transform_indices = @transform_6, window_bounds = array<i64: 8, 8>}]} {
    %c0_i32 = arith.constant 0 : i32
    %0 = arith.cmpi eq, %arg1, %c0_i32 : i32
    %1 = arith.extui %0 : i1 to i32
    %c0_i32_0 = arith.constant 0 : i32
    %2 = arith.cmpi ne, %1, %c0_i32_0 : i32
    scf.if %2 {
      %cst_96 = arith.constant 0.000000e+00 : f32
      %311 = vector.broadcast %cst_96 : f32 to vector<8x128xf32>
      %c0_97 = arith.constant 0 : index
      %c0_98 = arith.constant 0 : index
      %312 = vector.load %arg11[%c0_97, %c0_98] : memref<8x128xf32, #tpu.memory_space<vmem>>, vector<8x128xf32>
      tpu.vector_store %arg11[%c0_97, %c0_98], %311 {strides = array<i32>} : memref<8x128xf32, #tpu.memory_space<vmem>>, vector<8x128xf32>,
      %cst_99 = arith.constant 0.000000e+00 : f32
      %313 = vector.broadcast %cst_99 : f32 to vector<8x128xf32>
      %c0_100 = arith.constant 0 : index
      %c0_101 = arith.constant 0 : index
      %314 = vector.load %arg12[%c0_100, %c0_101] : memref<8x128xf32, #tpu.memory_space<vmem>>, vector<8x128xf32>
      tpu.vector_store %arg12[%c0_100, %c0_101], %313 {strides = array<i32>} : memref<8x128xf32, #tpu.memory_space<vmem>>, vector<8x128xf32>,
    } else {
    }
    %c0 = arith.constant 0 : index
    %c0_1 = arith.constant 0 : index
    %c0_2 = arith.constant 0 : index
    %3 = vector.load %arg2[%c0, %c0_1, %c0_2] : memref<8x8x128xbf16, #tpu.memory_space<vmem>>, vector<8x8x128xbf16>
    %4 = vector.shape_cast %3 : vector<8x8x128xbf16> to vector<64x128xbf16>
    %c0_3 = arith.constant 0 : index
    %c0_4 = arith.constant 0 : index
    %5 = vector.load %arg4[%c0_3, %c0_4] : memref<128x512xbf16, #tpu.memory_space<vmem>>, vector<128x512xbf16>
    %cst = arith.constant dense<0.000000e+00> : vector<64x512xf32>
    %6 = tpu.matmul %4, %5, %cst {dimension_numbers = #tpu.dot_dimension_numbers<[1], [0], [0], [1], [0, 0, 1, 1], [], []>} : vector<64x128xbf16>, vector<128x512xbf16>, vector<64x512xf32> -> vector<64x512xf32>
    %c0_5 = arith.constant 0 : index
    %c0_6 = arith.constant 0 : index
    %7 = vector.load %arg5[%c0_5, %c0_6] : memref<1x512xf32, #tpu.memory_space<vmem>>, vector<1x512xf32>
    %8 = vector.broadcast %7 : vector<1x512xf32> to vector<64x512xf32>
    %9 = arith.addf %6, %8 : vector<64x512xf32>
    %10 = vector.shape_cast %9 : vector<64x512xf32> to vector<8x8x512xf32>
    %c0_7 = arith.constant 0 : index
    %c0_8 = arith.constant 0 : index
    %c0_9 = arith.constant 0 : index
    %11 = vector.load %arg9[%c0_7, %c0_8, %c0_9] : memref<8x8x512xf32, #tpu.memory_space<vmem>>, vector<8x8x512xf32>
    tpu.vector_store %arg9[%c0_7, %c0_8, %c0_9], %10 {strides = array<i32>} : memref<8x8x512xf32, #tpu.memory_space<vmem>>, vector<8x8x512xf32>,
    %c0_10 = arith.constant 0 : index
    %c0_11 = arith.constant 0 : index
    %12 = vector.load %arg6[%c0_10, %c0_11] : memref<128x512xbf16, #tpu.memory_space<vmem>>, vector<128x512xbf16>
    %c0_12 = arith.constant 0 : index
    %c0_13 = arith.constant 0 : index
    %13 = vector.load %arg11[%c0_12, %c0_13] : memref<8x128xf32, #tpu.memory_space<vmem>>, vector<8x128xf32>
    %c0_14 = arith.constant 0 : index
    %c0_15 = arith.constant 0 : index
    %14 = vector.load %arg12[%c0_14, %c0_15] : memref<8x128xf32, #tpu.memory_space<vmem>>, vector<8x128xf32>
    %c0_i32_16 = arith.constant 0 : i32
    %15 = arith.index_cast %c0_i32_16 : i32 to index
    %c0_17 = arith.constant 0 : index
    %c0_18 = arith.constant 0 : index
    %16 = vector.load %arg9[%15, %c0_17, %c0_18] : memref<8x8x512xf32, #tpu.memory_space<vmem>>, vector<1x8x512xf32>
    %17 = vector.shape_cast %16 : vector<1x8x512xf32> to vector<8x512xf32>
    %18 = arith.truncf %13 : vector<8x128xf32> to vector<8x128xbf16>
    %cst_19 = arith.constant dense<0.000000e+00> : vector<8x512xf32>
    %19 = tpu.matmul %18, %12, %cst_19 {dimension_numbers = #tpu.dot_dimension_numbers<[1], [0], [0], [1], [0, 0, 1, 1], [], []>} : vector<8x128xbf16>, vector<128x512xbf16>, vector<8x512xf32> -> vector<8x512xf32>
    %20 = arith.addf %17, %19 : vector<8x512xf32>
    %21 = vector.extract_strided_slice %20 {offsets = [0, 0], sizes = [8, 128], strides = [1, 1]} : vector<8x512xf32> to vector<8x128xf32>
    %22 = arith.negf %21 : vector<8x128xf32>
    %23 = math.exp %22 : vector<8x128xf32>
    %cst_20 = arith.constant 1.000000e+00 : f32
    %24 = vector.broadcast %cst_20 : f32 to vector<8x128xf32>
    %25 = arith.addf %24, %23 : vector<8x128xf32>
    %26 = arith.divf %24, %25 : vector<8x128xf32>
    %27 = vector.extract_strided_slice %20 {offsets = [0, 128], sizes = [8, 128], strides = [1, 1]} : vector<8x512xf32> to vector<8x128xf32>
    %28 = arith.negf %27 : vector<8x128xf32>
    %29 = math.exp %28 : vector<8x128xf32>
    %cst_21 = arith.constant 1.000000e+00 : f32
    %30 = vector.broadcast %cst_21 : f32 to vector<8x128xf32>
    %31 = arith.addf %30, %29 : vector<8x128xf32>
    %32 = arith.divf %30, %31 : vector<8x128xf32>
    %33 = vector.extract_strided_slice %20 {offsets = [0, 256], sizes = [8, 128], strides = [1, 1]} : vector<8x512xf32> to vector<8x128xf32>
    %34 = math.tanh %33 : vector<8x128xf32>
    %35 = vector.extract_strided_slice %20 {offsets = [0, 384], sizes = [8, 128], strides = [1, 1]} : vector<8x512xf32> to vector<8x128xf32>
    %36 = arith.negf %35 : vector<8x128xf32>
    %37 = math.exp %36 : vector<8x128xf32>
    %cst_22 = arith.constant 1.000000e+00 : f32
    %38 = vector.broadcast %cst_22 : f32 to vector<8x128xf32>
    %39 = arith.addf %38, %37 : vector<8x128xf32>
    %40 = arith.divf %38, %39 : vector<8x128xf32>
    %41 = arith.mulf %32, %14 : vector<8x128xf32>
    %42 = arith.mulf %26, %34 : vector<8x128xf32>
    %43 = arith.addf %41, %42 : vector<8x128xf32>
    %44 = math.tanh %43 : vector<8x128xf32>
    %45 = arith.mulf %40, %44 : vector<8x128xf32>
    %46 = arith.index_cast %c0_i32_16 : i32 to index
    %c0_23 = arith.constant 0 : index
    %c0_24 = arith.constant 0 : index
    %47 = vector.load %arg10[%46, %c0_23, %c0_24] : memref<8x8x128xf32, #tpu.memory_space<vmem>>, vector<1x8x128xf32>
    %48 = vector.shape_cast %47 : vector<1x8x128xf32> to vector<8x128xf32>
    %49 = vector.shape_cast %45 : vector<8x128xf32> to vector<1x8x128xf32>
    tpu.vector_store %arg10[%46, %c0_23, %c0_24], %49 {strides = array<i32>} : memref<8x8x128xf32, #tpu.memory_space<vmem>>, vector<1x8x128xf32>,
    %c1_i32 = arith.constant 1 : i32
    %50 = arith.index_cast %c1_i32 : i32 to index
    %c0_25 = arith.constant 0 : index
    %c0_26 = arith.constant 0 : index
    %51 = vector.load %arg9[%50, %c0_25, %c0_26] : memref<8x8x512xf32, #tpu.memory_space<vmem>>, vector<1x8x512xf32>
    %52 = vector.shape_cast %51 : vector<1x8x512xf32> to vector<8x512xf32>
    %53 = arith.truncf %45 : vector<8x128xf32> to vector<8x128xbf16>
    %cst_27 = arith.constant dense<0.000000e+00> : vector<8x512xf32>
    %54 = tpu.matmul %53, %12, %cst_27 {dimension_numbers = #tpu.dot_dimension_numbers<[1], [0], [0], [1], [0, 0, 1, 1], [], []>} : vector<8x128xbf16>, vector<128x512xbf16>, vector<8x512xf32> -> vector<8x512xf32>
    %55 = arith.addf %52, %54 : vector<8x512xf32>
    %56 = vector.extract_strided_slice %55 {offsets = [0, 0], sizes = [8, 128], strides = [1, 1]} : vector<8x512xf32> to vector<8x128xf32>
    %57 = arith.negf %56 : vector<8x128xf32>
    %58 = math.exp %57 : vector<8x128xf32>
    %cst_28 = arith.constant 1.000000e+00 : f32
    %59 = vector.broadcast %cst_28 : f32 to vector<8x128xf32>
    %60 = arith.addf %59, %58 : vector<8x128xf32>
    %61 = arith.divf %59, %60 : vector<8x128xf32>
    %62 = vector.extract_strided_slice %55 {offsets = [0, 128], sizes = [8, 128], strides = [1, 1]} : vector<8x512xf32> to vector<8x128xf32>
    %63 = arith.negf %62 : vector<8x128xf32>
    %64 = math.exp %63 : vector<8x128xf32>
    %cst_29 = arith.constant 1.000000e+00 : f32
    %65 = vector.broadcast %cst_29 : f32 to vector<8x128xf32>
    %66 = arith.addf %65, %64 : vector<8x128xf32>
    %67 = arith.divf %65, %66 : vector<8x128xf32>
    %68 = vector.extract_strided_slice %55 {offsets = [0, 256], sizes = [8, 128], strides = [1, 1]} : vector<8x512xf32> to vector<8x128xf32>
    %69 = math.tanh %68 : vector<8x128xf32>
    %70 = vector.extract_strided_slice %55 {offsets = [0, 384], sizes = [8, 128], strides = [1, 1]} : vector<8x512xf32> to vector<8x128xf32>
    %71 = arith.negf %70 : vector<8x128xf32>
    %72 = math.exp %71 : vector<8x128xf32>
    %cst_30 = arith.constant 1.000000e+00 : f32
    %73 = vector.broadcast %cst_30 : f32 to vector<8x128xf32>
    %74 = arith.addf %73, %72 : vector<8x128xf32>
    %75 = arith.divf %73, %74 : vector<8x128xf32>
    %76 = arith.mulf %67, %43 : vector<8x128xf32>
    %77 = arith.mulf %61, %69 : vector<8x128xf32>
    %78 = arith.addf %76, %77 : vector<8x128xf32>
    %79 = math.tanh %78 : vector<8x128xf32>
    %80 = arith.mulf %75, %79 : vector<8x128xf32>
    %81 = arith.index_cast %c1_i32 : i32 to index
    %c0_31 = arith.constant 0 : index
    %c0_32 = arith.constant 0 : index
    %82 = vector.load %arg10[%81, %c0_31, %c0_32] : memref<8x8x128xf32, #tpu.memory_space<vmem>>, vector<1x8x128xf32>
    %83 = vector.shape_cast %82 : vector<1x8x128xf32> to vector<8x128xf32>
    %84 = vector.shape_cast %80 : vector<8x128xf32> to vector<1x8x128xf32>
    tpu.vector_store %arg10[%81, %c0_31, %c0_32], %84 {strides = array<i32>} : memref<8x8x128xf32, #tpu.memory_space<vmem>>, vector<1x8x128xf32>,
    %c2_i32 = arith.constant 2 : i32
    %85 = arith.index_cast %c2_i32 : i32 to index
    %c0_33 = arith.constant 0 : index
    %c0_34 = arith.constant 0 : index
    %86 = vector.load %arg9[%85, %c0_33, %c0_34] : memref<8x8x512xf32, #tpu.memory_space<vmem>>, vector<1x8x512xf32>
    %87 = vector.shape_cast %86 : vector<1x8x512xf32> to vector<8x512xf32>
    %88 = arith.truncf %80 : vector<8x128xf32> to vector<8x128xbf16>
    %cst_35 = arith.constant dense<0.000000e+00> : vector<8x512xf32>
    %89 = tpu.matmul %88, %12, %cst_35 {dimension_numbers = #tpu.dot_dimension_numbers<[1], [0], [0], [1], [0, 0, 1, 1], [], []>} : vector<8x128xbf16>, vector<128x512xbf16>, vector<8x512xf32> -> vector<8x512xf32>
    %90 = arith.addf %87, %89 : vector<8x512xf32>
    %91 = vector.extract_strided_slice %90 {offsets = [0, 0], sizes = [8, 128], strides = [1, 1]} : vector<8x512xf32> to vector<8x128xf32>
    %92 = arith.negf %91 : vector<8x128xf32>
    %93 = math.exp %92 : vector<8x128xf32>
    %cst_36 = arith.constant 1.000000e+00 : f32
    %94 = vector.broadcast %cst_36 : f32 to vector<8x128xf32>
    %95 = arith.addf %94, %93 : vector<8x128xf32>
    %96 = arith.divf %94, %95 : vector<8x128xf32>
    %97 = vector.extract_strided_slice %90 {offsets = [0, 128], sizes = [8, 128], strides = [1, 1]} : vector<8x512xf32> to vector<8x128xf32>
    %98 = arith.negf %97 : vector<8x128xf32>
    %99 = math.exp %98 : vector<8x128xf32>
    %cst_37 = arith.constant 1.000000e+00 : f32
    %100 = vector.broadcast %cst_37 : f32 to vector<8x128xf32>
    %101 = arith.addf %100, %99 : vector<8x128xf32>
    %102 = arith.divf %100, %101 : vector<8x128xf32>
    %103 = vector.extract_strided_slice %90 {offsets = [0, 256], sizes = [8, 128], strides = [1, 1]} : vector<8x512xf32> to vector<8x128xf32>
    %104 = math.tanh %103 : vector<8x128xf32>
    %105 = vector.extract_strided_slice %90 {offsets = [0, 384], sizes = [8, 128], strides = [1, 1]} : vector<8x512xf32> to vector<8x128xf32>
    %106 = arith.negf %105 : vector<8x128xf32>
    %107 = math.exp %106 : vector<8x128xf32>
    %cst_38 = arith.constant 1.000000e+00 : f32
    %108 = vector.broadcast %cst_38 : f32 to vector<8x128xf32>
    %109 = arith.addf %108, %107 : vector<8x128xf32>
    %110 = arith.divf %108, %109 : vector<8x128xf32>
    %111 = arith.mulf %102, %78 : vector<8x128xf32>
    %112 = arith.mulf %96, %104 : vector<8x128xf32>
    %113 = arith.addf %111, %112 : vector<8x128xf32>
    %114 = math.tanh %113 : vector<8x128xf32>
    %115 = arith.mulf %110, %114 : vector<8x128xf32>
    %116 = arith.index_cast %c2_i32 : i32 to index
    %c0_39 = arith.constant 0 : index
    %c0_40 = arith.constant 0 : index
    %117 = vector.load %arg10[%116, %c0_39, %c0_40] : memref<8x8x128xf32, #tpu.memory_space<vmem>>, vector<1x8x128xf32>
    %118 = vector.shape_cast %117 : vector<1x8x128xf32> to vector<8x128xf32>
    %119 = vector.shape_cast %115 : vector<8x128xf32> to vector<1x8x128xf32>
    tpu.vector_store %arg10[%116, %c0_39, %c0_40], %119 {strides = array<i32>} : memref<8x8x128xf32, #tpu.memory_space<vmem>>, vector<1x8x128xf32>,
    %c3_i32 = arith.constant 3 : i32
    %120 = arith.index_cast %c3_i32 : i32 to index
    %c0_41 = arith.constant 0 : index
    %c0_42 = arith.constant 0 : index
    %121 = vector.load %arg9[%120, %c0_41, %c0_42] : memref<8x8x512xf32, #tpu.memory_space<vmem>>, vector<1x8x512xf32>
    %122 = vector.shape_cast %121 : vector<1x8x512xf32> to vector<8x512xf32>
    %123 = arith.truncf %115 : vector<8x128xf32> to vector<8x128xbf16>
    %cst_43 = arith.constant dense<0.000000e+00> : vector<8x512xf32>
    %124 = tpu.matmul %123, %12, %cst_43 {dimension_numbers = #tpu.dot_dimension_numbers<[1], [0], [0], [1], [0, 0, 1, 1], [], []>} : vector<8x128xbf16>, vector<128x512xbf16>, vector<8x512xf32> -> vector<8x512xf32>
    %125 = arith.addf %122, %124 : vector<8x512xf32>
    %126 = vector.extract_strided_slice %125 {offsets = [0, 0], sizes = [8, 128], strides = [1, 1]} : vector<8x512xf32> to vector<8x128xf32>
    %127 = arith.negf %126 : vector<8x128xf32>
    %128 = math.exp %127 : vector<8x128xf32>
    %cst_44 = arith.constant 1.000000e+00 : f32
    %129 = vector.broadcast %cst_44 : f32 to vector<8x128xf32>
    %130 = arith.addf %129, %128 : vector<8x128xf32>
    %131 = arith.divf %129, %130 : vector<8x128xf32>
    %132 = vector.extract_strided_slice %125 {offsets = [0, 128], sizes = [8, 128], strides = [1, 1]} : vector<8x512xf32> to vector<8x128xf32>
    %133 = arith.negf %132 : vector<8x128xf32>
    %134 = math.exp %133 : vector<8x128xf32>
    %cst_45 = arith.constant 1.000000e+00 : f32
    %135 = vector.broadcast %cst_45 : f32 to vector<8x128xf32>
    %136 = arith.addf %135, %134 : vector<8x128xf32>
    %137 = arith.divf %135, %136 : vector<8x128xf32>
    %138 = vector.extract_strided_slice %125 {offsets = [0, 256], sizes = [8, 128], strides = [1, 1]} : vector<8x512xf32> to vector<8x128xf32>
    %139 = math.tanh %138 : vector<8x128xf32>
    %140 = vector.extract_strided_slice %125 {offsets = [0, 384], sizes = [8, 128], strides = [1, 1]} : vector<8x512xf32> to vector<8x128xf32>
    %141 = arith.negf %140 : vector<8x128xf32>
    %142 = math.exp %141 : vector<8x128xf32>
    %cst_46 = arith.constant 1.000000e+00 : f32
    %143 = vector.broadcast %cst_46 : f32 to vector<8x128xf32>
    %144 = arith.addf %143, %142 : vector<8x128xf32>
    %145 = arith.divf %143, %144 : vector<8x128xf32>
    %146 = arith.mulf %137, %113 : vector<8x128xf32>
    %147 = arith.mulf %131, %139 : vector<8x128xf32>
    %148 = arith.addf %146, %147 : vector<8x128xf32>
    %149 = math.tanh %148 : vector<8x128xf32>
    %150 = arith.mulf %145, %149 : vector<8x128xf32>
    %151 = arith.index_cast %c3_i32 : i32 to index
    %c0_47 = arith.constant 0 : index
    %c0_48 = arith.constant 0 : index
    %152 = vector.load %arg10[%151, %c0_47, %c0_48] : memref<8x8x128xf32, #tpu.memory_space<vmem>>, vector<1x8x128xf32>
    %153 = vector.shape_cast %152 : vector<1x8x128xf32> to vector<8x128xf32>
    %154 = vector.shape_cast %150 : vector<8x128xf32> to vector<1x8x128xf32>
    tpu.vector_store %arg10[%151, %c0_47, %c0_48], %154 {strides = array<i32>} : memref<8x8x128xf32, #tpu.memory_space<vmem>>, vector<1x8x128xf32>,
    %c4_i32 = arith.constant 4 : i32
    %155 = arith.index_cast %c4_i32 : i32 to index
    %c0_49 = arith.constant 0 : index
    %c0_50 = arith.constant 0 : index
    %156 = vector.load %arg9[%155, %c0_49, %c0_50] : memref<8x8x512xf32, #tpu.memory_space<vmem>>, vector<1x8x512xf32>
    %157 = vector.shape_cast %156 : vector<1x8x512xf32> to vector<8x512xf32>
    %158 = arith.truncf %150 : vector<8x128xf32> to vector<8x128xbf16>
    %cst_51 = arith.constant dense<0.000000e+00> : vector<8x512xf32>
    %159 = tpu.matmul %158, %12, %cst_51 {dimension_numbers = #tpu.dot_dimension_numbers<[1], [0], [0], [1], [0, 0, 1, 1], [], []>} : vector<8x128xbf16>, vector<128x512xbf16>, vector<8x512xf32> -> vector<8x512xf32>
    %160 = arith.addf %157, %159 : vector<8x512xf32>
    %161 = vector.extract_strided_slice %160 {offsets = [0, 0], sizes = [8, 128], strides = [1, 1]} : vector<8x512xf32> to vector<8x128xf32>
    %162 = arith.negf %161 : vector<8x128xf32>
    %163 = math.exp %162 : vector<8x128xf32>
    %cst_52 = arith.constant 1.000000e+00 : f32
    %164 = vector.broadcast %cst_52 : f32 to vector<8x128xf32>
    %165 = arith.addf %164, %163 : vector<8x128xf32>
    %166 = arith.divf %164, %165 : vector<8x128xf32>
    %167 = vector.extract_strided_slice %160 {offsets = [0, 128], sizes = [8, 128], strides = [1, 1]} : vector<8x512xf32> to vector<8x128xf32>
    %168 = arith.negf %167 : vector<8x128xf32>
    %169 = math.exp %168 : vector<8x128xf32>
    %cst_53 = arith.constant 1.000000e+00 : f32
    %170 = vector.broadcast %cst_53 : f32 to vector<8x128xf32>
    %171 = arith.addf %170, %169 : vector<8x128xf32>
    %172 = arith.divf %170, %171 : vector<8x128xf32>
    %173 = vector.extract_strided_slice %160 {offsets = [0, 256], sizes = [8, 128], strides = [1, 1]} : vector<8x512xf32> to vector<8x128xf32>
    %174 = math.tanh %173 : vector<8x128xf32>
    %175 = vector.extract_strided_slice %160 {offsets = [0, 384], sizes = [8, 128], strides = [1, 1]} : vector<8x512xf32> to vector<8x128xf32>
    %176 = arith.negf %175 : vector<8x128xf32>
    %177 = math.exp %176 : vector<8x128xf32>
    %cst_54 = arith.constant 1.000000e+00 : f32
    %178 = vector.broadcast %cst_54 : f32 to vector<8x128xf32>
    %179 = arith.addf %178, %177 : vector<8x128xf32>
    %180 = arith.divf %178, %179 : vector<8x128xf32>
    %181 = arith.mulf %172, %148 : vector<8x128xf32>
    %182 = arith.mulf %166, %174 : vector<8x128xf32>
    %183 = arith.addf %181, %182 : vector<8x128xf32>
    %184 = math.tanh %183 : vector<8x128xf32>
    %185 = arith.mulf %180, %184 : vector<8x128xf32>
    %186 = arith.index_cast %c4_i32 : i32 to index
    %c0_55 = arith.constant 0 : index
    %c0_56 = arith.constant 0 : index
    %187 = vector.load %arg10[%186, %c0_55, %c0_56] : memref<8x8x128xf32, #tpu.memory_space<vmem>>, vector<1x8x128xf32>
    %188 = vector.shape_cast %187 : vector<1x8x128xf32> to vector<8x128xf32>
    %189 = vector.shape_cast %185 : vector<8x128xf32> to vector<1x8x128xf32>
    tpu.vector_store %arg10[%186, %c0_55, %c0_56], %189 {strides = array<i32>} : memref<8x8x128xf32, #tpu.memory_space<vmem>>, vector<1x8x128xf32>,
    %c5_i32 = arith.constant 5 : i32
    %190 = arith.index_cast %c5_i32 : i32 to index
    %c0_57 = arith.constant 0 : index
    %c0_58 = arith.constant 0 : index
    %191 = vector.load %arg9[%190, %c0_57, %c0_58] : memref<8x8x512xf32, #tpu.memory_space<vmem>>, vector<1x8x512xf32>
    %192 = vector.shape_cast %191 : vector<1x8x512xf32> to vector<8x512xf32>
    %193 = arith.truncf %185 : vector<8x128xf32> to vector<8x128xbf16>
    %cst_59 = arith.constant dense<0.000000e+00> : vector<8x512xf32>
    %194 = tpu.matmul %193, %12, %cst_59 {dimension_numbers = #tpu.dot_dimension_numbers<[1], [0], [0], [1], [0, 0, 1, 1], [], []>} : vector<8x128xbf16>, vector<128x512xbf16>, vector<8x512xf32> -> vector<8x512xf32>
    %195 = arith.addf %192, %194 : vector<8x512xf32>
    %196 = vector.extract_strided_slice %195 {offsets = [0, 0], sizes = [8, 128], strides = [1, 1]} : vector<8x512xf32> to vector<8x128xf32>
    %197 = arith.negf %196 : vector<8x128xf32>
    %198 = math.exp %197 : vector<8x128xf32>
    %cst_60 = arith.constant 1.000000e+00 : f32
    %199 = vector.broadcast %cst_60 : f32 to vector<8x128xf32>
    %200 = arith.addf %199, %198 : vector<8x128xf32>
    %201 = arith.divf %199, %200 : vector<8x128xf32>
    %202 = vector.extract_strided_slice %195 {offsets = [0, 128], sizes = [8, 128], strides = [1, 1]} : vector<8x512xf32> to vector<8x128xf32>
    %203 = arith.negf %202 : vector<8x128xf32>
    %204 = math.exp %203 : vector<8x128xf32>
    %cst_61 = arith.constant 1.000000e+00 : f32
    %205 = vector.broadcast %cst_61 : f32 to vector<8x128xf32>
    %206 = arith.addf %205, %204 : vector<8x128xf32>
    %207 = arith.divf %205, %206 : vector<8x128xf32>
    %208 = vector.extract_strided_slice %195 {offsets = [0, 256], sizes = [8, 128], strides = [1, 1]} : vector<8x512xf32> to vector<8x128xf32>
    %209 = math.tanh %208 : vector<8x128xf32>
    %210 = vector.extract_strided_slice %195 {offsets = [0, 384], sizes = [8, 128], strides = [1, 1]} : vector<8x512xf32> to vector<8x128xf32>
    %211 = arith.negf %210 : vector<8x128xf32>
    %212 = math.exp %211 : vector<8x128xf32>
    %cst_62 = arith.constant 1.000000e+00 : f32
    %213 = vector.broadcast %cst_62 : f32 to vector<8x128xf32>
    %214 = arith.addf %213, %212 : vector<8x128xf32>
    %215 = arith.divf %213, %214 : vector<8x128xf32>
    %216 = arith.mulf %207, %183 : vector<8x128xf32>
    %217 = arith.mulf %201, %209 : vector<8x128xf32>
    %218 = arith.addf %216, %217 : vector<8x128xf32>
    %219 = math.tanh %218 : vector<8x128xf32>
    %220 = arith.mulf %215, %219 : vector<8x128xf32>
    %221 = arith.index_cast %c5_i32 : i32 to index
    %c0_63 = arith.constant 0 : index
    %c0_64 = arith.constant 0 : index
    %222 = vector.load %arg10[%221, %c0_63, %c0_64] : memref<8x8x128xf32, #tpu.memory_space<vmem>>, vector<1x8x128xf32>
    %223 = vector.shape_cast %222 : vector<1x8x128xf32> to vector<8x128xf32>
    %224 = vector.shape_cast %220 : vector<8x128xf32> to vector<1x8x128xf32>
    tpu.vector_store %arg10[%221, %c0_63, %c0_64], %224 {strides = array<i32>} : memref<8x8x128xf32, #tpu.memory_space<vmem>>, vector<1x8x128xf32>,
    %c6_i32 = arith.constant 6 : i32
    %225 = arith.index_cast %c6_i32 : i32 to index
    %c0_65 = arith.constant 0 : index
    %c0_66 = arith.constant 0 : index
    %226 = vector.load %arg9[%225, %c0_65, %c0_66] : memref<8x8x512xf32, #tpu.memory_space<vmem>>, vector<1x8x512xf32>
    %227 = vector.shape_cast %226 : vector<1x8x512xf32> to vector<8x512xf32>
    %228 = arith.truncf %220 : vector<8x128xf32> to vector<8x128xbf16>
    %cst_67 = arith.constant dense<0.000000e+00> : vector<8x512xf32>
    %229 = tpu.matmul %228, %12, %cst_67 {dimension_numbers = #tpu.dot_dimension_numbers<[1], [0], [0], [1], [0, 0, 1, 1], [], []>} : vector<8x128xbf16>, vector<128x512xbf16>, vector<8x512xf32> -> vector<8x512xf32>
    %230 = arith.addf %227, %229 : vector<8x512xf32>
    %231 = vector.extract_strided_slice %230 {offsets = [0, 0], sizes = [8, 128], strides = [1, 1]} : vector<8x512xf32> to vector<8x128xf32>
    %232 = arith.negf %231 : vector<8x128xf32>
    %233 = math.exp %232 : vector<8x128xf32>
    %cst_68 = arith.constant 1.000000e+00 : f32
    %234 = vector.broadcast %cst_68 : f32 to vector<8x128xf32>
    %235 = arith.addf %234, %233 : vector<8x128xf32>
    %236 = arith.divf %234, %235 : vector<8x128xf32>
    %237 = vector.extract_strided_slice %230 {offsets = [0, 128], sizes = [8, 128], strides = [1, 1]} : vector<8x512xf32> to vector<8x128xf32>
    %238 = arith.negf %237 : vector<8x128xf32>
    %239 = math.exp %238 : vector<8x128xf32>
    %cst_69 = arith.constant 1.000000e+00 : f32
    %240 = vector.broadcast %cst_69 : f32 to vector<8x128xf32>
    %241 = arith.addf %240, %239 : vector<8x128xf32>
    %242 = arith.divf %240, %241 : vector<8x128xf32>
    %243 = vector.extract_strided_slice %230 {offsets = [0, 256], sizes = [8, 128], strides = [1, 1]} : vector<8x512xf32> to vector<8x128xf32>
    %244 = math.tanh %243 : vector<8x128xf32>
    %245 = vector.extract_strided_slice %230 {offsets = [0, 384], sizes = [8, 128], strides = [1, 1]} : vector<8x512xf32> to vector<8x128xf32>
    %246 = arith.negf %245 : vector<8x128xf32>
    %247 = math.exp %246 : vector<8x128xf32>
    %cst_70 = arith.constant 1.000000e+00 : f32
    %248 = vector.broadcast %cst_70 : f32 to vector<8x128xf32>
    %249 = arith.addf %248, %247 : vector<8x128xf32>
    %250 = arith.divf %248, %249 : vector<8x128xf32>
    %251 = arith.mulf %242, %218 : vector<8x128xf32>
    %252 = arith.mulf %236, %244 : vector<8x128xf32>
    %253 = arith.addf %251, %252 : vector<8x128xf32>
    %254 = math.tanh %253 : vector<8x128xf32>
    %255 = arith.mulf %250, %254 : vector<8x128xf32>
    %256 = arith.index_cast %c6_i32 : i32 to index
    %c0_71 = arith.constant 0 : index
    %c0_72 = arith.constant 0 : index
    %257 = vector.load %arg10[%256, %c0_71, %c0_72] : memref<8x8x128xf32, #tpu.memory_space<vmem>>, vector<1x8x128xf32>
    %258 = vector.shape_cast %257 : vector<1x8x128xf32> to vector<8x128xf32>
    %259 = vector.shape_cast %255 : vector<8x128xf32> to vector<1x8x128xf32>
    tpu.vector_store %arg10[%256, %c0_71, %c0_72], %259 {strides = array<i32>} : memref<8x8x128xf32, #tpu.memory_space<vmem>>, vector<1x8x128xf32>,
    %c7_i32 = arith.constant 7 : i32
    %260 = arith.index_cast %c7_i32 : i32 to index
    %c0_73 = arith.constant 0 : index
    %c0_74 = arith.constant 0 : index
    %261 = vector.load %arg9[%260, %c0_73, %c0_74] : memref<8x8x512xf32, #tpu.memory_space<vmem>>, vector<1x8x512xf32>
    %262 = vector.shape_cast %261 : vector<1x8x512xf32> to vector<8x512xf32>
    %263 = arith.truncf %255 : vector<8x128xf32> to vector<8x128xbf16>
    %cst_75 = arith.constant dense<0.000000e+00> : vector<8x512xf32>
    %264 = tpu.matmul %263, %12, %cst_75 {dimension_numbers = #tpu.dot_dimension_numbers<[1], [0], [0], [1], [0, 0, 1, 1], [], []>} : vector<8x128xbf16>, vector<128x512xbf16>, vector<8x512xf32> -> vector<8x512xf32>
    %265 = arith.addf %262, %264 : vector<8x512xf32>
    %266 = vector.extract_strided_slice %265 {offsets = [0, 0], sizes = [8, 128], strides = [1, 1]} : vector<8x512xf32> to vector<8x128xf32>
    %267 = arith.negf %266 : vector<8x128xf32>
    %268 = math.exp %267 : vector<8x128xf32>
    %cst_76 = arith.constant 1.000000e+00 : f32
    %269 = vector.broadcast %cst_76 : f32 to vector<8x128xf32>
    %270 = arith.addf %269, %268 : vector<8x128xf32>
    %271 = arith.divf %269, %270 : vector<8x128xf32>
    %272 = vector.extract_strided_slice %265 {offsets = [0, 128], sizes = [8, 128], strides = [1, 1]} : vector<8x512xf32> to vector<8x128xf32>
    %273 = arith.negf %272 : vector<8x128xf32>
    %274 = math.exp %273 : vector<8x128xf32>
    %cst_77 = arith.constant 1.000000e+00 : f32
    %275 = vector.broadcast %cst_77 : f32 to vector<8x128xf32>
    %276 = arith.addf %275, %274 : vector<8x128xf32>
    %277 = arith.divf %275, %276 : vector<8x128xf32>
    %278 = vector.extract_strided_slice %265 {offsets = [0, 256], sizes = [8, 128], strides = [1, 1]} : vector<8x512xf32> to vector<8x128xf32>
    %279 = math.tanh %278 : vector<8x128xf32>
    %280 = vector.extract_strided_slice %265 {offsets = [0, 384], sizes = [8, 128], strides = [1, 1]} : vector<8x512xf32> to vector<8x128xf32>
    %281 = arith.negf %280 : vector<8x128xf32>
    %282 = math.exp %281 : vector<8x128xf32>
    %cst_78 = arith.constant 1.000000e+00 : f32
    %283 = vector.broadcast %cst_78 : f32 to vector<8x128xf32>
    %284 = arith.addf %283, %282 : vector<8x128xf32>
    %285 = arith.divf %283, %284 : vector<8x128xf32>
    %286 = arith.mulf %277, %253 : vector<8x128xf32>
    %287 = arith.mulf %271, %279 : vector<8x128xf32>
    %288 = arith.addf %286, %287 : vector<8x128xf32>
    %289 = math.tanh %288 : vector<8x128xf32>
    %290 = arith.mulf %285, %289 : vector<8x128xf32>
    %291 = arith.index_cast %c7_i32 : i32 to index
    %c0_79 = arith.constant 0 : index
    %c0_80 = arith.constant 0 : index
    %292 = vector.load %arg10[%291, %c0_79, %c0_80] : memref<8x8x128xf32, #tpu.memory_space<vmem>>, vector<1x8x128xf32>
    %293 = vector.shape_cast %292 : vector<1x8x128xf32> to vector<8x128xf32>
    %294 = vector.shape_cast %290 : vector<8x128xf32> to vector<1x8x128xf32>
    tpu.vector_store %arg10[%291, %c0_79, %c0_80], %294 {strides = array<i32>} : memref<8x8x128xf32, #tpu.memory_space<vmem>>, vector<1x8x128xf32>,
    %c8_i32 = arith.constant 8 : i32
    %c0_81 = arith.constant 0 : index
    %c0_82 = arith.constant 0 : index
    %295 = vector.load %arg11[%c0_81, %c0_82] : memref<8x128xf32, #tpu.memory_space<vmem>>, vector<8x128xf32>
    tpu.vector_store %arg11[%c0_81, %c0_82], %290 {strides = array<i32>} : memref<8x128xf32, #tpu.memory_space<vmem>>, vector<8x128xf32>,
    %c0_83 = arith.constant 0 : index
    %c0_84 = arith.constant 0 : index
    %296 = vector.load %arg12[%c0_83, %c0_84] : memref<8x128xf32, #tpu.memory_space<vmem>>, vector<8x128xf32>
    tpu.vector_store %arg12[%c0_83, %c0_84], %288 {strides = array<i32>} : memref<8x128xf32, #tpu.memory_space<vmem>>, vector<8x128xf32>,
    %c0_85 = arith.constant 0 : index
    %c0_86 = arith.constant 0 : index
    %297 = vector.load %arg7[%c0_85, %c0_86] : memref<1x128xf32, #tpu.memory_space<vmem>>, vector<1x128xf32>
    %c0_87 = arith.constant 0 : index
    %c0_88 = arith.constant 0 : index
    %c0_89 = arith.constant 0 : index
    %298 = vector.load %arg10[%c0_87, %c0_88, %c0_89] : memref<8x8x128xf32, #tpu.memory_space<vmem>>, vector<8x8x128xf32>
    %299 = vector.shape_cast %297 : vector<1x128xf32> to vector<1x1x128xf32>
    %300 = vector.broadcast %299 : vector<1x1x128xf32> to vector<8x8x128xf32>
    %301 = arith.mulf %298, %300 : vector<8x8x128xf32>
    %cst_90 = arith.constant dense<0.000000e+00> : vector<8x8xf32>
    %302 = vector.multi_reduction <add>, %301, %cst_90 [2] : vector<8x8x128xf32> to vector<8x8xf32>
    %c0_91 = arith.constant 0 : index
    %c0_92 = arith.constant 0 : index
    %303 = vector.load %arg3[%c0_91, %c0_92] : memref<8x8xf32, #tpu.memory_space<vmem>>, vector<8x8xf32>
    %304 = arith.addf %302, %303 : vector<8x8xf32>
    %305 = arith.negf %304 : vector<8x8xf32>
    %306 = math.exp %305 : vector<8x8xf32>
    %cst_93 = arith.constant 1.000000e+00 : f32
    %307 = vector.broadcast %cst_93 : f32 to vector<8x8xf32>
    %308 = arith.addf %307, %306 : vector<8x8xf32>
    %309 = arith.divf %307, %308 : vector<8x8xf32>
    %c0_94 = arith.constant 0 : index
    %c0_95 = arith.constant 0 : index
    %310 = vector.load %arg8[%c0_94, %c0_95] : memref<8x8xf32, #tpu.memory_space<vmem>>, vector<8x8xf32>
    tpu.vector_store %arg8[%c0_94, %c0_95], %309 {strides = array<i32>} : memref<8x8xf32, #tpu.memory_space<vmem>>, vector<8x8xf32>,
    return
  }
  func.func @transform_0(%arg0: i32, %arg1: i32) -> (i32, i32, i32) {
    %c0_i32 = arith.constant 0 : i32
    %c0_i32_0 = arith.constant 0 : i32
    return %arg1, %arg0, %c0_i32 : i32, i32, i32
  }
  func.func @transform_1(%arg0: i32, %arg1: i32) -> (i32, i32) {
    %c0_i32 = arith.constant 0 : i32
    return %arg1, %arg0 : i32, i32
  }
  func.func @transform_2(%arg0: i32, %arg1: i32) -> (i32, i32) {
    %c0_i32 = arith.constant 0 : i32
    %c0_i32_0 = arith.constant 0 : i32
    %c0_i32_1 = arith.constant 0 : i32
    return %c0_i32, %c0_i32_0 : i32, i32
  }
  func.func @transform_3(%arg0: i32, %arg1: i32) -> (i32, i32) {
    %c0_i32 = arith.constant 0 : i32
    %c0_i32_0 = arith.constant 0 : i32
    %c0_i32_1 = arith.constant 0 : i32
    return %c0_i32, %c0_i32_0 : i32, i32
  }
  func.func @transform_4(%arg0: i32, %arg1: i32) -> (i32, i32) {
    %c0_i32 = arith.constant 0 : i32
    %c0_i32_0 = arith.constant 0 : i32
    %c0_i32_1 = arith.constant 0 : i32
    return %c0_i32, %c0_i32_0 : i32, i32
  }
  func.func @transform_5(%arg0: i32, %arg1: i32) -> (i32, i32) {
    %c0_i32 = arith.constant 0 : i32
    %c0_i32_0 = arith.constant 0 : i32
    %c0_i32_1 = arith.constant 0 : i32
    return %c0_i32, %c0_i32_0 : i32, i32
  }
  func.func @transform_6(%arg0: i32, %arg1: i32) -> (i32, i32) {
    %c0_i32 = arith.constant 0 : i32
    return %arg1, %arg0 : i32, i32
  }
}

</mosaic_0001>

<llo_original>
// kernel: tpu_custom_call.1
$region0: #{tpu_custom_call.1}
  #allocation0 [shape = 'u32[]', space=smem, size = 0x4, offset = 0x4, fixed_abs, tag = 'smem constant byte address 0x4 - core index']
  #allocation1 [shape = 'u32[144,128]{1,0:T(1,128)}', space=vmem, size = 0x12000, scoped, tag = 'internal scratch']
  #allocation2 [shape = 'f32[8,8,512]{2,1,0:T(8,128)}', space=vmem, size = 0x20000, scoped, tag = 'scratch operand']
  #allocation3 [shape = 'f32[8,8,128]{2,1,0:T(8,128)}', space=vmem, size = 0x8000, scoped, tag = 'scratch operand']
  #allocation4 [shape = 'f32[8,128]{1,0:T(8,128)}', space=vmem, size = 0x1000, scoped, tag = 'scratch operand']
  #allocation5 [shape = 'f32[8,128]{1,0:T(8,128)}', space=vmem, size = 0x1000, scoped, tag = 'scratch operand']
  %s0 = inlined_call_operand.hbm [shape: bf16[8,8,128], index: 0, kind: input, shape index: {}]
  %s1 = inlined_call_operand.hbm [shape: f32[8,8], index: 1, kind: input, shape index: {}]
  %s2 = inlined_call_operand.hbm [shape: bf16[128,512], index: 2, kind: input, shape index: {}]
  %s3 = inlined_call_operand.vmem [shape: f32[1,512], index: 3, kind: input, shape index: {}]
  %s4 = inlined_call_operand.hbm [shape: bf16[128,512], index: 4, kind: input, shape index: {}]
  %s5 = inlined_call_operand.vmem [shape: f32[1,128], index: 5, kind: input, shape index: {}]
  %s6 = inlined_call_operand.hbm [shape: f32[8,8], index: 6, kind: output, shape index: {}]
  %s7 = sld [smem:[#allocation0]]
  $region54: #{tpu_custom_call.1} parent=0
    _
  %s9 = ssub.s32 1, %s7
  %s10 = scalar_select 0, %s9, %s7
  $region1: #{tpu_custom_call.1} parent=0
    #allocation6 [shape = 'u8[16384]{0}', space=vmem, size = 0x4000, scoped, tag = 'input window, operand 0, single buffered']
    #allocation7 [shape = 's32[1]{0}', space=sflag, size = 0x4, scoped, tag = 'scoped memory for tpu_custom_call.1']
    #allocation8 [shape = 's32[1]{0}', space=sflag, size = 0x4, scoped, tag = 'scoped memory for tpu_custom_call.1']
    #allocation9 [shape = 'u8[4096]{0}', space=vmem, size = 0x1000, scoped, tag = 'input window, operand 1, single buffered']
    #allocation10 [shape = 's32[1]{0}', space=sflag, size = 0x4, scoped, tag = 'scoped memory for tpu_custom_call.1']
    #allocation11 [shape = 'u8[131072]{0}', space=vmem, size = 0x20000, scoped, tag = 'input window, operand 2, single buffered']
    #allocation12 [shape = 'u8[131072]{0}', space=vmem, size = 0x20000, scoped, tag = 'input window, operand 4, single buffered']
    #allocation13 [shape = 's32[1]{0}', space=sflag, size = 0x4, scoped, tag = 'scoped memory for tpu_custom_call.1']
    #allocation14 [shape = 'u8[4096]{0}', space=vmem, size = 0x1000, scoped, tag = 'output window, operand 0, single buffered']
    %11 = vsyncpa [#allocation7], 0
    %12 = vsyncpa [#allocation10], 0
    %13 = vsyncpa [#allocation13], 0
    %14 = vsyncpa [#allocation8], 0
    // Predicated region
    $region2: #{tpu_custom_call.1} parent=1 // pred_check
      _
    $region3: #{tpu_custom_call.1} parent=1 // pred_check_branch
      %16 = sbr.rel (0) target = $region5
    $region4: #{tpu_custom_call.1} parent=1 // pred_region
      %s18 = ssub.s32 512, 512
      %19 = vsyncadd [#allocation7], %s18
      %s20 = sshll.u32 [#allocation6], 4
      %s21 = int_to_ptr.vmem [resolvable:$true] %s20
      %26 = dma.hbm_to_vmem [thread:$0]  %s0, 512, %s21, [#allocation7], 64, 64, 4
    $region5: #{tpu_custom_call.1} parent=1 // pred_fallthru
      _
    // Predicated region
    $region6: #{tpu_custom_call.1} parent=1 // pred_check
      _
    $region7: #{tpu_custom_call.1} parent=1 // pred_check_branch
      %28 = sbr.rel (0) target = $region9
    $region8: #{tpu_custom_call.1} parent=1 // pred_region
      %s30 = ssub.s32 128, 128
      %31 = vsyncadd [#allocation10], %s30
      %s33 = sshll.u32 [#allocation9], 4
      %s34 = int_to_ptr.vmem [resolvable:$true] %s33
      %36 = dma.hbm_to_vmem [thread:$0]  %s1, 128, %s34, [#allocation10]
    $region9: #{tpu_custom_call.1} parent=1 // pred_fallthru
      _
    // Predicated region
    $region10: #{tpu_custom_call.1} parent=1 // pred_check
      _
    $region11: #{tpu_custom_call.1} parent=1 // pred_check_branch
      %38 = sbr.rel (0) target = $region13
    $region12: #{tpu_custom_call.1} parent=1 // pred_region
      %s40 = ssub.s32 4096, 4096
      %41 = vsyncadd [#allocation10], %s40
      %s42 = sshll.u32 [#allocation11], 4
      %s43 = int_to_ptr.vmem [resolvable:$true] %s42
      %48 = dma.hbm_to_vmem [thread:$0]  %s2, 4096, %s43, [#allocation10], 256, 256, 16
    $region13: #{tpu_custom_call.1} parent=1 // pred_fallthru
      _
    // Predicated region
    $region14: #{tpu_custom_call.1} parent=1 // pred_check
      _
    $region15: #{tpu_custom_call.1} parent=1 // pred_check_branch
      %50 = sbr.rel (0) target = $region17
    $region16: #{tpu_custom_call.1} parent=1 // pred_region
      _
    $region17: #{tpu_custom_call.1} parent=1 // pred_fallthru
      _
    // Predicated region
    $region18: #{tpu_custom_call.1} parent=1 // pred_check
      _
    $region19: #{tpu_custom_call.1} parent=1 // pred_check_branch
      %52 = sbr.rel (0) target = $region21
    $region20: #{tpu_custom_call.1} parent=1 // pred_region
      %s54 = ssub.s32 4096, 4096
      %55 = vsyncadd [#allocation13], %s54
      %s56 = sshll.u32 [#allocation12], 4
      %s57 = int_to_ptr.vmem [resolvable:$true] %s56
      %62 = dma.hbm_to_vmem [thread:$0]  %s4, 4096, %s57, [#allocation13], 256, 256, 16
    $region21: #{tpu_custom_call.1} parent=1 // pred_fallthru
      _
    // Predicated region
    $region22: #{tpu_custom_call.1} parent=1 // pred_check
      _
    $region23: #{tpu_custom_call.1} parent=1 // pred_check_branch
      %64 = sbr.rel (0) target = $region25
    $region24: #{tpu_custom_call.1} parent=1 // pred_region
      _
    $region25: #{tpu_custom_call.1} parent=1 // pred_fallthru
      _
    // Predicated region
    $region26: #{tpu_custom_call.1} parent=1 // pred_check
      _
    $region27: #{tpu_custom_call.1} parent=1 // pred_check_branch
      %66 = sbr.rel (0) target = $region29
    $region28: #{tpu_custom_call.1} parent=1 // pred_region
      %67 = dma.done [#allocation7], 512
    $region29: #{tpu_custom_call.1} parent=1 // pred_fallthru
      _
    // Predicated region
    $region30: #{tpu_custom_call.1} parent=1 // pred_check
      _
    $region31: #{tpu_custom_call.1} parent=1 // pred_check_branch
      %69 = sbr.rel (0) target = $region33
    $region32: #{tpu_custom_call.1} parent=1 // pred_region
      %70 = dma.done [#allocation10], 128
    $region33: #{tpu_custom_call.1} parent=1 // pred_fallthru
      _
    // Predicated region
    $region34: #{tpu_custom_call.1} parent=1 // pred_check
      _
    $region35: #{tpu_custom_call.1} parent=1 // pred_check_branch
      %72 = sbr.rel (0) target = $region37
    $region36: #{tpu_custom_call.1} parent=1 // pred_region
      %73 = dma.done [#allocation10], 4096
    $region37: #{tpu_custom_call.1} parent=1 // pred_fallthru
      _
    // Predicated region
    $region38: #{tpu_custom_call.1} parent=1 // pred_check
      _
    $region39: #{tpu_custom_call.1} parent=1 // pred_check_branch
      %75 = sbr.rel (0) target = $region41
    $region40: #{tpu_custom_call.1} parent=1 // pred_region
      %76 = dma.done [#allocation13], 4096
    $region41: #{tpu_custom_call.1} parent=1 // pred_fallthru
      _
    %p78 = scmp.eq.s32.totalorder 0, 0
    // Predicated region
    $region42: #{tpu_custom_call.1} parent=1 // pred_check
      %p79 = pneg %p78
    $region43: #{tpu_custom_call.1} parent=1 // pred_check_branch
      %81 = sbr.rel (%p79) target = $region45
    $region44: #{tpu_custom_call.1} parent=1 // pred_region
      %82 = vst [vmem:[#allocation4] sm:$0xff] 0.0
      %83 = vst [vmem:[#allocation5] sm:$0xff] 0.0
    $region45: #{tpu_custom_call.1} parent=1 // pred_fallthru
      _
    %v84 = vld [vmem:[#allocation6] sm:$0xf]
    %v85 = vld [vmem:[#allocation6 + $0x4] sm:$0xf]
    %v86 = vld [vmem:[#allocation6 + $0x8] sm:$0xf]
    %v87 = vld [vmem:[#allocation6 + $0xc] sm:$0xf]
    %v88 = vld [vmem:[#allocation6 + $0x10] sm:$0xf]
    %v89 = vld [vmem:[#allocation6 + $0x14] sm:$0xf]
    %v90 = vld [vmem:[#allocation6 + $0x18] sm:$0xf]
    %v91 = vld [vmem:[#allocation6 + $0x1c] sm:$0xf]
    %v92 = vld [vmem:[#allocation11] sm:$0xff]
    %v93 = vld [vmem:[#allocation11 + $0x8] sm:$0xff]
    %v94 = vld [vmem:[#allocation11 + $0x10] sm:$0xff]
    %v95 = vld [vmem:[#allocation11 + $0x18] sm:$0xff]
    %v96 = vld [vmem:[#allocation11 + $0x20] sm:$0xff]
    %v97 = vld [vmem:[#allocation11 + $0x28] sm:$0xff]
    %v98 = vld [vmem:[#allocation11 + $0x30] sm:$0xff]
    %v99 = vld [vmem:[#allocation11 + $0x38] sm:$0xff]
    %v100 = vld [vmem:[#allocation11 + $0x40] sm:$0xff]
    %v101 = vld [vmem:[#allocation11 + $0x48] sm:$0xff]
    %v102 = vld [vmem:[#allocation11 + $0x50] sm:$0xff]
    %v103 = vld [vmem:[#allocation11 + $0x58] sm:$0xff]
    %v104 = vld [vmem:[#allocation11 + $0x60] sm:$0xff]
    %v105 = vld [vmem:[#allocation11 + $0x68] sm:$0xff]
    %v106 = vld [vmem:[#allocation11 + $0x70] sm:$0xff]
    %v107 = vld [vmem:[#allocation11 + $0x78] sm:$0xff]
    %v108 = vld [vmem:[#allocation11 + $0x80] sm:$0xff]
    %v109 = vld [vmem:[#allocation11 + $0x88] sm:$0xff]
    %v110 = vld [vmem:[#allocation11 + $0x90] sm:$0xff]
    %v111 = vld [vmem:[#allocation11 + $0x98] sm:$0xff]
    %v112 = vld [vmem:[#allocation11 + $0xa0] sm:$0xff]
    %v113 = vld [vmem:[#allocation11 + $0xa8] sm:$0xff]
    %v114 = vld [vmem:[#allocation11 + $0xb0] sm:$0xff]
    %v115 = vld [vmem:[#allocation11 + $0xb8] sm:$0xff]
    %v116 = vld [vmem:[#allocation11 + $0xc0] sm:$0xff]
    %v117 = vld [vmem:[#allocation11 + $0xc8] sm:$0xff]
    %v118 = vld [vmem:[#allocation11 + $0xd0] sm:$0xff]
    %v119 = vld [vmem:[#allocation11 + $0xd8] sm:$0xff]
    %v120 = vld [vmem:[#allocation11 + $0xe0] sm:$0xff]
    %v121 = vld [vmem:[#allocation11 + $0xe8] sm:$0xff]
    %v122 = vld [vmem:[#allocation11 + $0xf0] sm:$0xff]
    %v123 = vld [vmem:[#allocation11 + $0xf8] sm:$0xff]
    %v124 = vld [vmem:[%s3] sm:$0xf]
    %v126 = vlaneseq
    %v127 = vshrl.u32 %v126, 7
    %v128 = vsub.s32 0, %v127
    %v129 = vrot.slane %v124, %v128
    %v130 = vlaneseq
    %v131 = vshrl.u32 %v130, 7
    %v132 = vsub.s32 1, %v131
    %v133 = vrot.slane %v124, %v132
    %v134 = vlaneseq
    %v135 = vshrl.u32 %v134, 7
    %v136 = vsub.s32 2, %v135
    %v137 = vrot.slane %v124, %v136
    %v138 = vlaneseq
    %v139 = vshrl.u32 %v138, 7
    %v140 = vsub.s32 3, %v139
    %v141 = vrot.slane %v124, %v140
    %v154 = vunpack.c.l.b16 %v84
    %v155 = vunpack.c.l.b16 %v85
    %v156 = vunpack.c.l.b16 %v86
    %v157 = vunpack.c.l.b16 %v87
    %v158 = vunpack.c.l.b16 %v88
    %v159 = vunpack.c.l.b16 %v89
    %v160 = vunpack.c.l.b16 %v90
    %v161 = vunpack.c.l.b16 %v91
    %v162 = vpack.c.b16 %v155, %v154
    %v163 = vpack.c.b16 %v157, %v156
    %v164 = vpack.c.b16 %v159, %v158
    %v165 = vpack.c.b16 %v161, %v160
    %v202 = vunpack.c.l.b16 %v92
    %v203 = vunpack.c.h.b16 %v92
    %v204 = vunpack.c.l.b16 %v93
    %v205 = vunpack.c.h.b16 %v93
    %v206 = vunpack.c.l.b16 %v94
    %v207 = vunpack.c.h.b16 %v94
    %v208 = vunpack.c.l.b16 %v95
    %v209 = vunpack.c.h.b16 %v95
    %v210 = vunpack.c.l.b16 %v96
    %v211 = vunpack.c.h.b16 %v96
    %v212 = vunpack.c.l.b16 %v97
    %v213 = vunpack.c.h.b16 %v97
    %v214 = vunpack.c.l.b16 %v98
    %v215 = vunpack.c.h.b16 %v98
    %v216 = vunpack.c.l.b16 %v99
    %v217 = vunpack.c.h.b16 %v99
    %v218 = vunpack.c.l.b16 %v100
    %v219 = vunpack.c.h.b16 %v100
    %v220 = vunpack.c.l.b16 %v101
    %v221 = vunpack.c.h.b16 %v101
    %v222 = vunpack.c.l.b16 %v102
    %v223 = vunpack.c.h.b16 %v102
    %v224 = vunpack.c.l.b16 %v103
    %v225 = vunpack.c.h.b16 %v103
    %v226 = vunpack.c.l.b16 %v104
    %v227 = vunpack.c.h.b16 %v104
    %v228 = vunpack.c.l.b16 %v105
    %v229 = vunpack.c.h.b16 %v105
    %v230 = vunpack.c.l.b16 %v106
    %v231 = vunpack.c.h.b16 %v106
    %v232 = vunpack.c.l.b16 %v107
    %v233 = vunpack.c.h.b16 %v107
    %v234 = vunpack.c.l.b16 %v108
    %v235 = vunpack.c.h.b16 %v108
    %v236 = vunpack.c.l.b16 %v109
    %v237 = vunpack.c.h.b16 %v109
    %v238 = vunpack.c.l.b16 %v110
    %v239 = vunpack.c.h.b16 %v110
    %v240 = vunpack.c.l.b16 %v111
    %v241 = vunpack.c.h.b16 %v111
    %v242 = vunpack.c.l.b16 %v112
    %v243 = vunpack.c.h.b16 %v112
    %v244 = vunpack.c.l.b16 %v113
    %v245 = vunpack.c.h.b16 %v113
    %v246 = vunpack.c.l.b16 %v114
    %v247 = vunpack.c.h.b16 %v114
    %v248 = vunpack.c.l.b16 %v115
    %v249 = vunpack.c.h.b16 %v115
    %v250 = vunpack.c.l.b16 %v116
    %v251 = vunpack.c.h.b16 %v116
    %v252 = vunpack.c.l.b16 %v117
    %v253 = vunpack.c.h.b16 %v117
    %v254 = vunpack.c.l.b16 %v118
    %v255 = vunpack.c.h.b16 %v118
    %v256 = vunpack.c.l.b16 %v119
    %v257 = vunpack.c.h.b16 %v119
    %v258 = vunpack.c.l.b16 %v120
    %v259 = vunpack.c.h.b16 %v120
    %v260 = vunpack.c.l.b16 %v121
    %v261 = vunpack.c.h.b16 %v121
    %v262 = vunpack.c.l.b16 %v122
    %v263 = vunpack.c.h.b16 %v122
    %v264 = vunpack.c.l.b16 %v123
    %v265 = vunpack.c.h.b16 %v123
    %v266 = vpack.c.b16 %v206, %v202
    %v267 = vpack.c.b16 %v207, %v203
    %v268 = vpack.c.b16 %v208, %v204
    %v269 = vpack.c.b16 %v209, %v205
    %v270 = vpack.c.b16 %v214, %v210
    %v271 = vpack.c.b16 %v215, %v211
    %v272 = vpack.c.b16 %v216, %v212
    %v273 = vpack.c.b16 %v217, %v213
    %v274 = vpack.c.b16 %v222, %v218
    %v275 = vpack.c.b16 %v223, %v219
    %v276 = vpack.c.b16 %v224, %v220
    %v277 = vpack.c.b16 %v225, %v221
    %v278 = vpack.c.b16 %v230, %v226
    %v279 = vpack.c.b16 %v231, %v227
    %v280 = vpack.c.b16 %v232, %v228
    %v281 = vpack.c.b16 %v233, %v229
    %v282 = vpack.c.b16 %v238, %v234
    %v283 = vpack.c.b16 %v239, %v235
    %v284 = vpack.c.b16 %v240, %v236
    %v285 = vpack.c.b16 %v241, %v237
    %v286 = vpack.c.b16 %v246, %v242
    %v287 = vpack.c.b16 %v247, %v243
    %v288 = vpack.c.b16 %v248, %v244
    %v289 = vpack.c.b16 %v249, %v245
    %v290 = vpack.c.b16 %v254, %v250
    %v291 = vpack.c.b16 %v255, %v251
    %v292 = vpack.c.b16 %v256, %v252
    %v293 = vpack.c.b16 %v257, %v253
    %v294 = vpack.c.b16 %v262, %v258
    %v295 = vpack.c.b16 %v263, %v259
    %v296 = vpack.c.b16 %v264, %v260
    %v297 = vpack.c.b16 %v265, %v261
    %330 = vmatprep.subr.bf16.mxu0 %v267
    %331 = vmatpush1.bf16.msra.mxu0 %v266
    %332 = vmatprep.subr.bf16.mxu0 %v271
    %333 = vmatpush1.bf16.msra.mxu0 %v270
    %334 = vmatprep.subr.bf16.mxu0 %v275
    %335 = vmatpush1.bf16.msra.mxu0 %v274
    %336 = vmatprep.subr.bf16.mxu0 %v279
    %337 = vmatpush1.bf16.msra.mxu0 %v278
    %338 = vmatprep.subr.bf16.mxu0 %v283
    %339 = vmatpush1.bf16.msra.mxu0 %v282
    %340 = vmatprep.subr.bf16.mxu0 %v287
    %341 = vmatpush1.bf16.msra.mxu0 %v286
    %342 = vmatprep.subr.bf16.mxu0 %v291
    %343 = vmatpush1.bf16.msra.mxu0 %v290
    %344 = vmatprep.subr.bf16.mxu0 %v295
    %345 = vmatpush1.bf16.msra.mxu0 %v294
    %346 = vmatprep.subr.bf16.mxu0 0
    %347 = vmatpush1.bf16.msra.mxu0 0
    %348 = vmatprep.subr.bf16.mxu0 0
    %349 = vmatpush1.bf16.msra.mxu0 0
    %350 = vmatprep.subr.bf16.mxu0 0
    %351 = vmatpush1.bf16.msra.mxu0 0
    %352 = vmatprep.subr.bf16.mxu0 0
    %353 = vmatpush1.bf16.msra.mxu0 0
    %354 = vmatprep.subr.bf16.mxu0 0
    %355 = vmatpush1.bf16.msra.mxu0 0
    %356 = vmatprep.subr.bf16.mxu0 0
    %357 = vmatpush1.bf16.msra.mxu0 0
    %358 = vmatprep.subr.bf16.mxu0 0
    %359 = vmatpush1.bf16.msra.mxu0 0
    %360 = vmatprep.subr.bf16.mxu0 0
    %361 = vmatpush1.bf16.msra.mxu0 0
    %362 = vmatprep.mubr.bf16.mxu0 0
    %363 = vmatmul.mubr.bf16.gmra.mrb[0].mxu0 %v162
    %v364 = vpop.f32.mrb[0].mxu0
    %v365 = vadd.f32 %v129, %v364
    %v366 = vpop.f32.mrb[0].mxu0
    %v367 = vadd.f32 %v133, %v366
    %v368 = vpop.f32.mrb[0].mxu0
    %v369 = vadd.f32 %v129, %v368
    %v370 = vpop.f32.mrb[0].mxu0
    %v371 = vadd.f32 %v133, %v370
    %372 = vmatprep.mubr.bf16.mxu0 0
    %373 = vmatmul.mubr.bf16.gmra.mrb[0].mxu0 %v163
    %v374 = vpop.f32.mrb[0].mxu0
    %v375 = vadd.f32 %v129, %v374
    %v376 = vpop.f32.mrb[0].mxu0
    %v377 = vadd.f32 %v133, %v376
    %v378 = vpop.f32.mrb[0].mxu0
    %v379 = vadd.f32 %v129, %v378
    %v380 = vpop.f32.mrb[0].mxu0
    %v381 = vadd.f32 %v133, %v380
    %382 = vmatprep.mubr.bf16.mxu0 0
    %383 = vmatmul.mubr.bf16.gmra.mrb[0].mxu0 %v164
    %v384 = vpop.f32.mrb[0].mxu0
    %v385 = vadd.f32 %v129, %v384
    %v386 = vpop.f32.mrb[0].mxu0
    %v387 = vadd.f32 %v133, %v386
    %v388 = vpop.f32.mrb[0].mxu0
    %v389 = vadd.f32 %v129, %v388
    %v390 = vpop.f32.mrb[0].mxu0
    %v391 = vadd.f32 %v133, %v390
    %392 = vmatprep.mubr.bf16.mxu0 0
    %393 = vmatmul.mubr.bf16.gmra.mrb[0].mxu0 %v165
    %v394 = vpop.f32.mrb[0].mxu0
    %v395 = vadd.f32 %v129, %v394
    %v396 = vpop.f32.mrb[0].mxu0
    %v397 = vadd.f32 %v133, %v396
    %v398 = vpop.f32.mrb[0].mxu0
    %v399 = vadd.f32 %v129, %v398
    %v400 = vpop.f32.mrb[0].mxu0
    %v401 = vadd.f32 %v133, %v400
    %402 = vdwg.mxu0
    %403 = vmatprep.subr.bf16.mxu0 %v269
    %404 = vmatpush1.bf16.msra.mxu0 %v268
    %405 = vmatprep.subr.bf16.mxu0 %v273
    %406 = vmatpush1.bf16.msra.mxu0 %v272
    %407 = vmatprep.subr.bf16.mxu0 %v277
    %408 = vmatpush1.bf16.msra.mxu0 %v276
    %409 = vmatprep.subr.bf16.mxu0 %v281
    %410 = vmatpush1.bf16.msra.mxu0 %v280
    %411 = vmatprep.subr.bf16.mxu0 %v285
    %412 = vmatpush1.bf16.msra.mxu0 %v284
    %413 = vmatprep.subr.bf16.mxu0 %v289
    %414 = vmatpush1.bf16.msra.mxu0 %v288
    %415 = vmatprep.subr.bf16.mxu0 %v293
    %416 = vmatpush1.bf16.msra.mxu0 %v292
    %417 = vmatprep.subr.bf16.mxu0 %v297
    %418 = vmatpush1.bf16.msra.mxu0 %v296
    %419 = vmatprep.subr.bf16.mxu0 0
    %420 = vmatpush1.bf16.msra.mxu0 0
    %421 = vmatprep.subr.bf16.mxu0 0
    %422 = vmatpush1.bf16.msra.mxu0 0
    %423 = vmatprep.subr.bf16.mxu0 0
    %424 = vmatpush1.bf16.msra.mxu0 0
    %425 = vmatprep.subr.bf16.mxu0 0
    %426 = vmatpush1.bf16.msra.mxu0 0
    %427 = vmatprep.subr.bf16.mxu0 0
    %428 = vmatpush1.bf16.msra.mxu0 0
    %429 = vmatprep.subr.bf16.mxu0 0
    %430 = vmatpush1.bf16.msra.mxu0 0
    %431 = vmatprep.subr.bf16.mxu0 0
    %432 = vmatpush1.bf16.msra.mxu0 0
    %433 = vmatprep.subr.bf16.mxu0 0
    %434 = vmatpush1.bf16.msra.mxu0 0
    %435 = vmatprep.mubr.bf16.mxu0 0
    %436 = vmatmul.mubr.bf16.gmra.mrb[0].mxu0 %v162
    %v437 = vpop.f32.mrb[0].mxu0
    %v438 = vadd.f32 %v137, %v437
    %v439 = vpop.f32.mrb[0].mxu0
    %v440 = vadd.f32 %v141, %v439
    %v441 = vpop.f32.mrb[0].mxu0
    %v442 = vadd.f32 %v137, %v441
    %v443 = vpop.f32.mrb[0].mxu0
    %v444 = vadd.f32 %v141, %v443
    %445 = vmatprep.mubr.bf16.mxu0 0
    %446 = vmatmul.mubr.bf16.gmra.mrb[0].mxu0 %v163
    %v447 = vpop.f32.mrb[0].mxu0
    %v448 = vadd.f32 %v137, %v447
    %v449 = vpop.f32.mrb[0].mxu0
    %v450 = vadd.f32 %v141, %v449
    %v451 = vpop.f32.mrb[0].mxu0
    %v452 = vadd.f32 %v137, %v451
    %v453 = vpop.f32.mrb[0].mxu0
    %v454 = vadd.f32 %v141, %v453
    %455 = vmatprep.mubr.bf16.mxu0 0
    %456 = vmatmul.mubr.bf16.gmra.mrb[0].mxu0 %v164
    %v457 = vpop.f32.mrb[0].mxu0
    %v458 = vadd.f32 %v137, %v457
    %v459 = vpop.f32.mrb[0].mxu0
    %v460 = vadd.f32 %v141, %v459
    %v461 = vpop.f32.mrb[0].mxu0
    %v462 = vadd.f32 %v137, %v461
    %v463 = vpop.f32.mrb[0].mxu0
    %v464 = vadd.f32 %v141, %v463
    %465 = vmatprep.mubr.bf16.mxu0 0
    %466 = vmatmul.mubr.bf16.gmra.mrb[0].mxu0 %v165
    %v467 = vpop.f32.mrb[0].mxu0
    %v468 = vadd.f32 %v137, %v467
    %v469 = vpop.f32.mrb[0].mxu0
    %v470 = vadd.f32 %v141, %v469
    %v471 = vpop.f32.mrb[0].mxu0
    %v472 = vadd.f32 %v137, %v471
    %v473 = vpop.f32.mrb[0].mxu0
    %v474 = vadd.f32 %v141, %v473
    %475 = vdwg.mxu0
    %476 = vst [vmem:[#allocation2] sm:$0xff] %v365
    %477 = vst [vmem:[#allocation2 + $0x8] sm:$0xff] %v367
    %478 = vst [vmem:[#allocation2 + $0x10] sm:$0xff] %v438
    %479 = vst [vmem:[#allocation2 + $0x18] sm:$0xff] %v440
    %480 = vst [vmem:[#allocation2 + $0x20] sm:$0xff] %v369
    %481 = vst [vmem:[#allocation2 + $0x28] sm:$0xff] %v371
    %482 = vst [vmem:[#allocation2 + $0x30] sm:$0xff] %v442
    %483 = vst [vmem:[#allocation2 + $0x38] sm:$0xff] %v444
    %484 = vst [vmem:[#allocation2 + $0x40] sm:$0xff] %v375
    %485 = vst [vmem:[#allocation2 + $0x48] sm:$0xff] %v377
    %486 = vst [vmem:[#allocation2 + $0x50] sm:$0xff] %v448
    %487 = vst [vmem:[#allocation2 + $0x58] sm:$0xff] %v450
    %488 = vst [vmem:[#allocation2 + $0x60] sm:$0xff] %v379
    %489 = vst [vmem:[#allocation2 + $0x68] sm:$0xff] %v381
    %490 = vst [vmem:[#allocation2 + $0x70] sm:$0xff] %v452
    %491 = vst [vmem:[#allocation2 + $0x78] sm:$0xff] %v454
    %492 = vst [vmem:[#allocation2 + $0x80] sm:$0xff] %v385
    %493 = vst [vmem:[#allocation2 + $0x88] sm:$0xff] %v387
    %494 = vst [vmem:[#allocation2 + $0x90] sm:$0xff] %v458
    %495 = vst [vmem:[#allocation2 + $0x98] sm:$0xff] %v460
    %496 = vst [vmem:[#allocation2 + $0xa0] sm:$0xff] %v389
    %497 = vst [vmem:[#allocation2 + $0xa8] sm:$0xff] %v391
    %498 = vst [vmem:[#allocation2 + $0xb0] sm:$0xff] %v462
    %499 = vst [vmem:[#allocation2 + $0xb8] sm:$0xff] %v464
    %500 = vst [vmem:[#allocation2 + $0xc0] sm:$0xff] %v395
    %501 = vst [vmem:[#allocation2 + $0xc8] sm:$0xff] %v397
    %502 = vst [vmem:[#allocation2 + $0xd0] sm:$0xff] %v468
    %503 = vst [vmem:[#allocation2 + $0xd8] sm:$0xff] %v470
    %504 = vst [vmem:[#allocation2 + $0xe0] sm:$0xff] %v399
    %505 = vst [vmem:[#allocation2 + $0xe8] sm:$0xff] %v401
    %506 = vst [vmem:[#allocation2 + $0xf0] sm:$0xff] %v472
    %507 = vst [vmem:[#allocation2 + $0xf8] sm:$0xff] %v474
    %v508 = vld [vmem:[#allocation12] sm:$0xff]
    %v509 = vld [vmem:[#allocation12 + $0x8] sm:$0xff]
    %v510 = vld [vmem:[#allocation12 + $0x10] sm:$0xff]
    %v511 = vld [vmem:[#allocation12 + $0x18] sm:$0xff]
    %v512 = vld [vmem:[#allocation12 + $0x20] sm:$0xff]
    %v513 = vld [vmem:[#allocation12 + $0x28] sm:$0xff]
    %v514 = vld [vmem:[#allocation12 + $0x30] sm:$0xff]
    %v515 = vld [vmem:[#allocation12 + $0x38] sm:$0xff]
    %v516 = vld [vmem:[#allocation12 + $0x40] sm:$0xff]
    %v517 = vld [vmem:[#allocation12 + $0x48] sm:$0xff]
    %v518 = vld [vmem:[#allocation12 + $0x50] sm:$0xff]
    %v519 = vld [vmem:[#allocation12 + $0x58] sm:$0xff]
    %v520 = vld [vmem:[#allocation12 + $0x60] sm:$0xff]
    %v521 = vld [vmem:[#allocation12 + $0x68] sm:$0xff]
    %v522 = vld [vmem:[#allocation12 + $0x70] sm:$0xff]
    %v523 = vld [vmem:[#allocation12 + $0x78] sm:$0xff]
    %v524 = vld [vmem:[#allocation12 + $0x80] sm:$0xff]
    %v525 = vld [vmem:[#allocation12 + $0x88] sm:$0xff]
    %v526 = vld [vmem:[#allocation12 + $0x90] sm:$0xff]
    %v527 = vld [vmem:[#allocation12 + $0x98] sm:$0xff]
    %v528 = vld [vmem:[#allocation12 + $0xa0] sm:$0xff]
    %v529 = vld [vmem:[#allocation12 + $0xa8] sm:$0xff]
    %v530 = vld [vmem:[#allocation12 + $0xb0] sm:$0xff]
    %v531 = vld [vmem:[#allocation12 + $0xb8] sm:$0xff]
    %v532 = vld [vmem:[#allocation12 + $0xc0] sm:$0xff]
    %v533 = vld [vmem:[#allocation12 + $0xc8] sm:$0xff]
    %v534 = vld [vmem:[#allocation12 + $0xd0] sm:$0xff]
    %v535 = vld [vmem:[#allocation12 + $0xd8] sm:$0xff]
    %v536 = vld [vmem:[#allocation12 + $0xe0] sm:$0xff]
    %v537 = vld [vmem:[#allocation12 + $0xe8] sm:$0xff]
    %v538 = vld [vmem:[#allocation12 + $0xf0] sm:$0xff]
    %v539 = vld [vmem:[#allocation12 + $0xf8] sm:$0xff]
    %v540 = vld [vmem:[#allocation4] sm:$0xff]
    %v541 = vld [vmem:[#allocation5] sm:$0xff]
    %v542 = vld [vmem:[#allocation2] sm:$0xff]
    %v543 = vld [vmem:[#allocation2 + $0x8] sm:$0xff]
    %v544 = vld [vmem:[#allocation2 + $0x10] sm:$0xff]
    %v545 = vld [vmem:[#allocation2 + $0x18] sm:$0xff]
    %v546 = vpack.c.bf16 %v540, %v540
    %v579 = vunpack.c.l.b16 %v508
    %v580 = vunpack.c.h.b16 %v508
    %v581 = vunpack.c.l.b16 %v509
    %v582 = vunpack.c.h.b16 %v509
    %v583 = vunpack.c.l.b16 %v510
    %v584 = vunpack.c.h.b16 %v510
    %v585 = vunpack.c.l.b16 %v511
    %v586 = vunpack.c.h.b16 %v511
    %v587 = vunpack.c.l.b16 %v512
    %v588 = vunpack.c.h.b16 %v512
    %v589 = vunpack.c.l.b16 %v513
    %v590 = vunpack.c.h.b16 %v513
    %v591 = vunpack.c.l.b16 %v514
    %v592 = vunpack.c.h.b16 %v514
    %v593 = vunpack.c.l.b16 %v515
    %v594 = vunpack.c.h.b16 %v515
    %v595 = vunpack.c.l.b16 %v516
    %v596 = vunpack.c.h.b16 %v516
    %v597 = vunpack.c.l.b16 %v517
    %v598 = vunpack.c.h.b16 %v517
    %v599 = vunpack.c.l.b16 %v518
    %v600 = vunpack.c.h.b16 %v518
    %v601 = vunpack.c.l.b16 %v519
    %v602 = vunpack.c.h.b16 %v519
    %v603 = vunpack.c.l.b16 %v520
    %v604 = vunpack.c.h.b16 %v520
    %v605 = vunpack.c.l.b16 %v521
    %v606 = vunpack.c.h.b16 %v521
    %v607 = vunpack.c.l.b16 %v522
    %v608 = vunpack.c.h.b16 %v522
    %v609 = vunpack.c.l.b16 %v523
    %v610 = vunpack.c.h.b16 %v523
    %v611 = vunpack.c.l.b16 %v524
    %v612 = vunpack.c.h.b16 %v524
    %v613 = vunpack.c.l.b16 %v525
    %v614 = vunpack.c.h.b16 %v525
    %v615 = vunpack.c.l.b16 %v526
    %v616 = vunpack.c.h.b16 %v526
    %v617 = vunpack.c.l.b16 %v527
    %v618 = vunpack.c.h.b16 %v527
    %v619 = vunpack.c.l.b16 %v528
    %v620 = vunpack.c.h.b16 %v528
    %v621 = vunpack.c.l.b16 %v529
    %v622 = vunpack.c.h.b16 %v529
    %v623 = vunpack.c.l.b16 %v530
    %v624 = vunpack.c.h.b16 %v530
    %v625 = vunpack.c.l.b16 %v531
    %v626 = vunpack.c.h.b16 %v531
    %v627 = vunpack.c.l.b16 %v532
    %v628 = vunpack.c.h.b16 %v532
    %v629 = vunpack.c.l.b16 %v533
    %v630 = vunpack.c.h.b16 %v533
    %v631 = vunpack.c.l.b16 %v534
    %v632 = vunpack.c.h.b16 %v534
    %v633 = vunpack.c.l.b16 %v535
    %v634 = vunpack.c.h.b16 %v535
    %v635 = vunpack.c.l.b16 %v536
    %v636 = vunpack.c.h.b16 %v536
    %v637 = vunpack.c.l.b16 %v537
    %v638 = vunpack.c.h.b16 %v537
    %v639 = vunpack.c.l.b16 %v538
    %v640 = vunpack.c.h.b16 %v538
    %v641 = vunpack.c.l.b16 %v539
    %v642 = vunpack.c.h.b16 %v539
    %v643 = vpack.c.b16 %v583, %v579
    %v644 = vpack.c.b16 %v584, %v580
    %v645 = vpack.c.b16 %v585, %v581
    %v646 = vpack.c.b16 %v586, %v582
    %v647 = vpack.c.b16 %v591, %v587
    %v648 = vpack.c.b16 %v592, %v588
    %v649 = vpack.c.b16 %v593, %v589
    %v650 = vpack.c.b16 %v594, %v590
    %v651 = vpack.c.b16 %v599, %v595
    %v652 = vpack.c.b16 %v600, %v596
    %v653 = vpack.c.b16 %v601, %v597
    %v654 = vpack.c.b16 %v602, %v598
    %v655 = vpack.c.b16 %v607, %v603
    %v656 = vpack.c.b16 %v608, %v604
    %v657 = vpack.c.b16 %v609, %v605
    %v658 = vpack.c.b16 %v610, %v606
    %v659 = vpack.c.b16 %v615, %v611
    %v660 = vpack.c.b16 %v616, %v612
    %v661 = vpack.c.b16 %v617, %v613
    %v662 = vpack.c.b16 %v618, %v614
    %v663 = vpack.c.b16 %v623, %v619
    %v664 = vpack.c.b16 %v624, %v620
    %v665 = vpack.c.b16 %v625, %v621
    %v666 = vpack.c.b16 %v626, %v622
    %v667 = vpack.c.b16 %v631, %v627
    %v668 = vpack.c.b16 %v632, %v628
    %v669 = vpack.c.b16 %v633, %v629
    %v670 = vpack.c.b16 %v634, %v630
    %v671 = vpack.c.b16 %v639, %v635
    %v672 = vpack.c.b16 %v640, %v636
    %v673 = vpack.c.b16 %v641, %v637
    %v674 = vpack.c.b16 %v642, %v638
    %707 = vmatprep.subr.bf16.mxu0 %v644
    %708 = vmatpush1.bf16.msra.mxu0 %v643
    %709 = vmatprep.subr.bf16.mxu0 %v648
    %710 = vmatpush1.bf16.msra.mxu0 %v647
    %711 = vmatprep.subr.bf16.mxu0 %v652
    %712 = vmatpush1.bf16.msra.mxu0 %v651
    %713 = vmatprep.subr.bf16.mxu0 %v656
    %714 = vmatpush1.bf16.msra.mxu0 %v655
    %715 = vmatprep.subr.bf16.mxu0 %v660
    %716 = vmatpush1.bf16.msra.mxu0 %v659
    %717 = vmatprep.subr.bf16.mxu0 %v664
    %718 = vmatpush1.bf16.msra.mxu0 %v663
    %719 = vmatprep.subr.bf16.mxu0 %v668
    %720 = vmatpush1.bf16.msra.mxu0 %v667
    %721 = vmatprep.subr.bf16.mxu0 %v672
    %722 = vmatpush1.bf16.msra.mxu0 %v671
    %723 = vmatprep.subr.bf16.mxu0 0
    %724 = vmatpush1.bf16.msra.mxu0 0
    %725 = vmatprep.subr.bf16.mxu0 0
    %726 = vmatpush1.bf16.msra.mxu0 0
    %727 = vmatprep.subr.bf16.mxu0 0
    %728 = vmatpush1.bf16.msra.mxu0 0
    %729 = vmatprep.subr.bf16.mxu0 0
    %730 = vmatpush1.bf16.msra.mxu0 0
    %731 = vmatprep.subr.bf16.mxu0 0
    %732 = vmatpush1.bf16.msra.mxu0 0
    %733 = vmatprep.subr.bf16.mxu0 0
    %734 = vmatpush1.bf16.msra.mxu0 0
    %735 = vmatprep.subr.bf16.mxu0 0
    %736 = vmatpush1.bf16.msra.mxu0 0
    %737 = vmatprep.subr.bf16.mxu0 0
    %738 = vmatpush1.bf16.msra.mxu0 0
    %739 = vmatprep.mubr.bf16.mxu0 0
    %740 = vmatmul.mubr.bf16.gmra.mrb[0].mxu0 %v546
    %v741 = vpop.f32.mrb[0].mxu0
    %v742 = vadd.f32 0.0, %v741
    %v743 = vpop.f32.mrb[0].mxu0
    %v744 = vadd.f32 0.0, %v743
    %v745 = vpop.f32.mrb[0].mxu0
    %v746 = vpop.f32.mrb[0].mxu0
    %747 = vdwg.mxu0
    %748 = vmatprep.subr.bf16.mxu0 %v646
    %749 = vmatpush1.bf16.msra.mxu0 %v645
    %750 = vmatprep.subr.bf16.mxu0 %v650
    %751 = vmatpush1.bf16.msra.mxu0 %v649
    %752 = vmatprep.subr.bf16.mxu0 %v654
    %753 = vmatpush1.bf16.msra.mxu0 %v653
    %754 = vmatprep.subr.bf16.mxu0 %v658
    %755 = vmatpush1.bf16.msra.mxu0 %v657
    %756 = vmatprep.subr.bf16.mxu0 %v662
    %757 = vmatpush1.bf16.msra.mxu0 %v661
    %758 = vmatprep.subr.bf16.mxu0 %v666
    %759 = vmatpush1.bf16.msra.mxu0 %v665
    %760 = vmatprep.subr.bf16.mxu0 %v670
    %761 = vmatpush1.bf16.msra.mxu0 %v669
    %762 = vmatprep.subr.bf16.mxu0 %v674
    %763 = vmatpush1.bf16.msra.mxu0 %v673
    %764 = vmatprep.subr.bf16.mxu0 0
    %765 = vmatpush1.bf16.msra.mxu0 0
    %766 = vmatprep.subr.bf16.mxu0 0
    %767 = vmatpush1.bf16.msra.mxu0 0
    %768 = vmatprep.subr.bf16.mxu0 0
    %769 = vmatpush1.bf16.msra.mxu0 0
    %770 = vmatprep.subr.bf16.mxu0 0
    %771 = vmatpush1.bf16.msra.mxu0 0
    %772 = vmatprep.subr.bf16.mxu0 0
    %773 = vmatpush1.bf16.msra.mxu0 0
    %774 = vmatprep.subr.bf16.mxu0 0
    %775 = vmatpush1.bf16.msra.mxu0 0
    %776 = vmatprep.subr.bf16.mxu0 0
    %777 = vmatpush1.bf16.msra.mxu0 0
    %778 = vmatprep.subr.bf16.mxu0 0
    %779 = vmatpush1.bf16.msra.mxu0 0
    %780 = vmatprep.mubr.bf16.mxu0 0
    %781 = vmatmul.mubr.bf16.gmra.mrb[0].mxu0 %v546
    %v782 = vpop.f32.mrb[0].mxu0
    %v783 = vadd.f32 0.0, %v782
    %v784 = vpop.f32.mrb[0].mxu0
    %v785 = vadd.f32 0.0, %v784
    %v786 = vpop.f32.mrb[0].mxu0
    %v787 = vpop.f32.mrb[0].mxu0
    %788 = vdwg.mxu0
    %v789 = vadd.f32 %v542, %v742
    %v790 = vadd.f32 %v543, %v744
    %v791 = vadd.f32 %v544, %v783
    %v792 = vadd.f32 %v545, %v785
    %v793 = vxor.u32 %v789, 2147483648
    %v794 = vmul.f32 %v793, 1.442695
    %v795 = vpow.pop %v794
    %v796 = vadd.f32 %v795, 1.0
    %v797 = vrcp.pop %v796
    %v798 = vmul.f32 1.0, %v797
    %v799 = vxor.u32 %v790, 2147483648
    %v800 = vmul.f32 %v799, 1.442695
    %v801 = vpow.pop %v800
    %v802 = vadd.f32 %v801, 1.0
    %v803 = vrcp.pop %v802
    %v804 = vmul.f32 1.0, %v803
    %v805 = vtanh.pop %v791
    %v806 = vxor.u32 %v792, 2147483648
    %v807 = vmul.f32 %v806, 1.442695
    %v808 = vpow.pop %v807
    %v809 = vadd.f32 %v808, 1.0
    %v810 = vrcp.pop %v809
    %v811 = vmul.f32 1.0, %v810
    %v812 = vmul.f32 %v804, %v541
    %v813 = vmul.f32 %v798, %v805
    %v814 = vadd.f32 %v812, %v813
    %v815 = vtanh.pop %v814
    %v816 = vmul.f32 %v811, %v815
    %817 = vst [vmem:[#allocation3] sm:$0xff] %v816
    %s818 = scalar_lea.vmem [#allocation2], 32
    %v819 = vld [vmem:[%s818] sm:$0xff]
    %v820 = vld [vmem:[%s818 + $0x8] sm:$0xff]
    %v821 = vld [vmem:[%s818 + $0x10] sm:$0xff]
    %v822 = vld [vmem:[%s818 + $0x18] sm:$0xff]
    %v823 = vpack.c.bf16 %v816, %v816
    %824 = vmatprep.subr.bf16.mxu0 %v644
    %825 = vmatpush1.bf16.msra.mxu0 %v643
    %826 = vmatprep.subr.bf16.mxu0 %v648
    %827 = vmatpush1.bf16.msra.mxu0 %v647
    %828 = vmatprep.subr.bf16.mxu0 %v652
    %829 = vmatpush1.bf16.msra.mxu0 %v651
    %830 = vmatprep.subr.bf16.mxu0 %v656
    %831 = vmatpush1.bf16.msra.mxu0 %v655
    %832 = vmatprep.subr.bf16.mxu0 %v660
    %833 = vmatpush1.bf16.msra.mxu0 %v659
    %834 = vmatprep.subr.bf16.mxu0 %v664
    %835 = vmatpush1.bf16.msra.mxu0 %v663
    %836 = vmatprep.subr.bf16.mxu0 %v668
    %837 = vmatpush1.bf16.msra.mxu0 %v667
    %838 = vmatprep.subr.bf16.mxu0 %v672
    %839 = vmatpush1.bf16.msra.mxu0 %v671
    %840 = vmatprep.subr.bf16.mxu0 0
    %841 = vmatpush1.bf16.msra.mxu0 0
    %842 = vmatprep.subr.bf16.mxu0 0
    %843 = vmatpush1.bf16.msra.mxu0 0
    %844 = vmatprep.subr.bf16.mxu0 0
    %845 = vmatpush1.bf16.msra.mxu0 0
    %846 = vmatprep.subr.bf16.mxu0 0
    %847 = vmatpush1.bf16.msra.mxu0 0
    %848 = vmatprep.subr.bf16.mxu0 0
    %849 = vmatpush1.bf16.msra.mxu0 0
    %850 = vmatprep.subr.bf16.mxu0 0
    %851 = vmatpush1.bf16.msra.mxu0 0
    %852 = vmatprep.subr.bf16.mxu0 0
    %853 = vmatpush1.bf16.msra.mxu0 0
    %854 = vmatprep.subr.bf16.mxu0 0
    %855 = vmatpush1.bf16.msra.mxu0 0
    %856 = vmatprep.mubr.bf16.mxu0 0
    %857 = vmatmul.mubr.bf16.gmra.mrb[0].mxu0 %v823
    %v858 = vpop.f32.mrb[0].mxu0
    %v859 = vadd.f32 0.0, %v858
    %v860 = vpop.f32.mrb[0].mxu0
    %v861 = vadd.f32 0.0, %v860
    %v862 = vpop.f32.mrb[0].mxu0
    %v863 = vpop.f32.mrb[0].mxu0
    %864 = vdwg.mxu0
    %865 = vmatprep.subr.bf16.mxu0 %v646
    %866 = vmatpush1.bf16.msra.mxu0 %v645
    %867 = vmatprep.subr.bf16.mxu0 %v650
    %868 = vmatpush1.bf16.msra.mxu0 %v649
    %869 = vmatprep.subr.bf16.mxu0 %v654
    %870 = vmatpush1.bf16.msra.mxu0 %v653
    %871 = vmatprep.subr.bf16.mxu0 %v658
    %872 = vmatpush1.bf16.msra.mxu0 %v657
    %873 = vmatprep.subr.bf16.mxu0 %v662
    %874 = vmatpush1.bf16.msra.mxu0 %v661
    %875 = vmatprep.subr.bf16.mxu0 %v666
    %876 = vmatpush1.bf16.msra.mxu0 %v665
    %877 = vmatprep.subr.bf16.mxu0 %v670
    %878 = vmatpush1.bf16.msra.mxu0 %v669
    %879 = vmatprep.subr.bf16.mxu0 %v674
    %880 = vmatpush1.bf16.msra.mxu0 %v673
    %881 = vmatprep.subr.bf16.mxu0 0
    %882 = vmatpush1.bf16.msra.mxu0 0
    %883 = vmatprep.subr.bf16.mxu0 0
    %884 = vmatpush1.bf16.msra.mxu0 0
    %885 = vmatprep.subr.bf16.mxu0 0
    %886 = vmatpush1.bf16.msra.mxu0 0
    %887 = vmatprep.subr.bf16.mxu0 0
    %888 = vmatpush1.bf16.msra.mxu0 0
    %889 = vmatprep.subr.bf16.mxu0 0
    %890 = vmatpush1.bf16.msra.mxu0 0
    %891 = vmatprep.subr.bf16.mxu0 0
    %892 = vmatpush1.bf16.msra.mxu0 0
    %893 = vmatprep.subr.bf16.mxu0 0
    %894 = vmatpush1.bf16.msra.mxu0 0
    %895 = vmatprep.subr.bf16.mxu0 0
    %896 = vmatpush1.bf16.msra.mxu0 0
    %897 = vmatprep.mubr.bf16.mxu0 0
    %898 = vmatmul.mubr.bf16.gmra.mrb[0].mxu0 %v823
    %v899 = vpop.f32.mrb[0].mxu0
    %v900 = vadd.f32 0.0, %v899
    %v901 = vpop.f32.mrb[0].mxu0
    %v902 = vadd.f32 0.0, %v901
    %v903 = vpop.f32.mrb[0].mxu0
    %v904 = vpop.f32.mrb[0].mxu0
    %905 = vdwg.mxu0
    %v906 = vadd.f32 %v819, %v859
    %v907 = vadd.f32 %v820, %v861
    %v908 = vadd.f32 %v821, %v900
    %v909 = vadd.f32 %v822, %v902
    %v910 = vxor.u32 %v906, 2147483648
    %v911 = vmul.f32 %v910, 1.442695
    %v912 = vpow.pop %v911
    %v913 = vadd.f32 %v912, 1.0
    %v914 = vrcp.pop %v913
    %v915 = vmul.f32 1.0, %v914
    %v916 = vxor.u32 %v907, 2147483648
    %v917 = vmul.f32 %v916, 1.442695
    %v918 = vpow.pop %v917
    %v919 = vadd.f32 %v918, 1.0
    %v920 = vrcp.pop %v919
    %v921 = vmul.f32 1.0, %v920
    %v922 = vtanh.pop %v908
    %v923 = vxor.u32 %v909, 2147483648
    %v924 = vmul.f32 %v923, 1.442695
    %v925 = vpow.pop %v924
    %v926 = vadd.f32 %v925, 1.0
    %v927 = vrcp.pop %v926
    %v928 = vmul.f32 1.0, %v927
    %v929 = vmul.f32 %v921, %v814
    %v930 = vmul.f32 %v915, %v922
    %v931 = vadd.f32 %v929, %v930
    %v932 = vtanh.pop %v931
    %v933 = vmul.f32 %v928, %v932
    %s934 = scalar_lea.vmem [#allocation3], 8
    %935 = vst [vmem:[%s934] sm:$0xff] %v933
    %s936 = scalar_lea.vmem [#allocation2], 64
    %v937 = vld [vmem:[%s936] sm:$0xff]
    %v938 = vld [vmem:[%s936 + $0x8] sm:$0xff]
    %v939 = vld [vmem:[%s936 + $0x10] sm:$0xff]
    %v940 = vld [vmem:[%s936 + $0x18] sm:$0xff]
    %v941 = vpack.c.bf16 %v933, %v933
    %942 = vmatprep.subr.bf16.mxu0 %v644
    %943 = vmatpush1.bf16.msra.mxu0 %v643
    %944 = vmatprep.subr.bf16.mxu0 %v648
    %945 = vmatpush1.bf16.msra.mxu0 %v647
    %946 = vmatprep.subr.bf16.mxu0 %v652
    %947 = vmatpush1.bf16.msra.mxu0 %v651
    %948 = vmatprep.subr.bf16.mxu0 %v656
    %949 = vmatpush1.bf16.msra.mxu0 %v655
    %950 = vmatprep.subr.bf16.mxu0 %v660
    %951 = vmatpush1.bf16.msra.mxu0 %v659
    %952 = vmatprep.subr.bf16.mxu0 %v664
    %953 = vmatpush1.bf16.msra.mxu0 %v663
    %954 = vmatprep.subr.bf16.mxu0 %v668
    %955 = vmatpush1.bf16.msra.mxu0 %v667
    %956 = vmatprep.subr.bf16.mxu0 %v672
    %957 = vmatpush1.bf16.msra.mxu0 %v671
    %958 = vmatprep.subr.bf16.mxu0 0
    %959 = vmatpush1.bf16.msra.mxu0 0
    %960 = vmatprep.subr.bf16.mxu0 0
    %961 = vmatpush1.bf16.msra.mxu0 0
    %962 = vmatprep.subr.bf16.mxu0 0
    %963 = vmatpush1.bf16.msra.mxu0 0
    %964 = vmatprep.subr.bf16.mxu0 0
    %965 = vmatpush1.bf16.msra.mxu0 0
    %966 = vmatprep.subr.bf16.mxu0 0
    %967 = vmatpush1.bf16.msra.mxu0 0
    %968 = vmatprep.subr.bf16.mxu0 0
    %969 = vmatpush1.bf16.msra.mxu0 0
    %970 = vmatprep.subr.bf16.mxu0 0
    %971 = vmatpush1.bf16.msra.mxu0 0
    %972 = vmatprep.subr.bf16.mxu0 0
    %973 = vmatpush1.bf16.msra.mxu0 0
    %974 = vmatprep.mubr.bf16.mxu0 0
    %975 = vmatmul.mubr.bf16.gmra.mrb[0].mxu0 %v941
    %v976 = vpop.f32.mrb[0].mxu0
    %v977 = vadd.f32 0.0, %v976
    %v978 = vpop.f32.mrb[0].mxu0
    %v979 = vadd.f32 0.0, %v978
    %v980 = vpop.f32.mrb[0].mxu0
    %v981 = vpop.f32.mrb[0].mxu0
    %982 = vdwg.mxu0
    %983 = vmatprep.subr.bf16.mxu0 %v646
    %984 = vmatpush1.bf16.msra.mxu0 %v645
    %985 = vmatprep.subr.bf16.mxu0 %v650
    %986 = vmatpush1.bf16.msra.mxu0 %v649
    %987 = vmatprep.subr.bf16.mxu0 %v654
    %988 = vmatpush1.bf16.msra.mxu0 %v653
    %989 = vmatprep.subr.bf16.mxu0 %v658
    %990 = vmatpush1.bf16.msra.mxu0 %v657
    %991 = vmatprep.subr.bf16.mxu0 %v662
    %992 = vmatpush1.bf16.msra.mxu0 %v661
    %993 = vmatprep.subr.bf16.mxu0 %v666
    %994 = vmatpush1.bf16.msra.mxu0 %v665
    %995 = vmatprep.subr.bf16.mxu0 %v670
    %996 = vmatpush1.bf16.msra.mxu0 %v669
    %997 = vmatprep.subr.bf16.mxu0 %v674
    %998 = vmatpush1.bf16.msra.mxu0 %v673
    %999 = vmatprep.subr.bf16.mxu0 0
    %1000 = vmatpush1.bf16.msra.mxu0 0
    %1001 = vmatprep.subr.bf16.mxu0 0
    %1002 = vmatpush1.bf16.msra.mxu0 0
    %1003 = vmatprep.subr.bf16.mxu0 0
    %1004 = vmatpush1.bf16.msra.mxu0 0
    %1005 = vmatprep.subr.bf16.mxu0 0
    %1006 = vmatpush1.bf16.msra.mxu0 0
    %1007 = vmatprep.subr.bf16.mxu0 0
    %1008 = vmatpush1.bf16.msra.mxu0 0
    %1009 = vmatprep.subr.bf16.mxu0 0
    %1010 = vmatpush1.bf16.msra.mxu0 0
    %1011 = vmatprep.subr.bf16.mxu0 0
    %1012 = vmatpush1.bf16.msra.mxu0 0
    %1013 = vmatprep.subr.bf16.mxu0 0
    %1014 = vmatpush1.bf16.msra.mxu0 0
    %1015 = vmatprep.mubr.bf16.mxu0 0
    %1016 = vmatmul.mubr.bf16.gmra.mrb[0].mxu0 %v941
    %v1017 = vpop.f32.mrb[0].mxu0
    %v1018 = vadd.f32 0.0, %v1017
    %v1019 = vpop.f32.mrb[0].mxu0
    %v1020 = vadd.f32 0.0, %v1019
    %v1021 = vpop.f32.mrb[0].mxu0
    %v1022 = vpop.f32.mrb[0].mxu0
    %1023 = vdwg.mxu0
    %v1024 = vadd.f32 %v937, %v977
    %v1025 = vadd.f32 %v938, %v979
    %v1026 = vadd.f32 %v939, %v1018
    %v1027 = vadd.f32 %v940, %v1020
    %v1028 = vxor.u32 %v1024, 2147483648
    %v1029 = vmul.f32 %v1028, 1.442695
    %v1030 = vpow.pop %v1029
    %v1031 = vadd.f32 %v1030, 1.0
    %v1032 = vrcp.pop %v1031
    %v1033 = vmul.f32 1.0, %v1032
    %v1034 = vxor.u32 %v1025, 2147483648
    %v1035 = vmul.f32 %v1034, 1.442695
    %v1036 = vpow.pop %v1035
    %v1037 = vadd.f32 %v1036, 1.0
    %v1038 = vrcp.pop %v1037
    %v1039 = vmul.f32 1.0, %v1038
    %v1040 = vtanh.pop %v1026
    %v1041 = vxor.u32 %v1027, 2147483648
    %v1042 = vmul.f32 %v1041, 1.442695
    %v1043 = vpow.pop %v1042
    %v1044 = vadd.f32 %v1043, 1.0
    %v1045 = vrcp.pop %v1044
    %v1046 = vmul.f32 1.0, %v1045
    %v1047 = vmul.f32 %v1039, %v931
    %v1048 = vmul.f32 %v1033, %v1040
    %v1049 = vadd.f32 %v1047, %v1048
    %v1050 = vtanh.pop %v1049
    %v1051 = vmul.f32 %v1046, %v1050
    %s1052 = scalar_lea.vmem [#allocation3], 16
    %1053 = vst [vmem:[%s1052] sm:$0xff] %v1051
    %s1054 = scalar_lea.vmem [#allocation2], 96
    %v1055 = vld [vmem:[%s1054] sm:$0xff]
    %v1056 = vld [vmem:[%s1054 + $0x8] sm:$0xff]
    %v1057 = vld [vmem:[%s1054 + $0x10] sm:$0xff]
    %v1058 = vld [vmem:[%s1054 + $0x18] sm:$0xff]
    %v1059 = vpack.c.bf16 %v1051, %v1051
    %1060 = vmatprep.subr.bf16.mxu0 %v644
    %1061 = vmatpush1.bf16.msra.mxu0 %v643
    %1062 = vmatprep.subr.bf16.mxu0 %v648
    %1063 = vmatpush1.bf16.msra.mxu0 %v647
    %1064 = vmatprep.subr.bf16.mxu0 %v652
    %1065 = vmatpush1.bf16.msra.mxu0 %v651
    %1066 = vmatprep.subr.bf16.mxu0 %v656
    %1067 = vmatpush1.bf16.msra.mxu0 %v655
    %1068 = vmatprep.subr.bf16.mxu0 %v660
    %1069 = vmatpush1.bf16.msra.mxu0 %v659
    %1070 = vmatprep.subr.bf16.mxu0 %v664
    %1071 = vmatpush1.bf16.msra.mxu0 %v663
    %1072 = vmatprep.subr.bf16.mxu0 %v668
    %1073 = vmatpush1.bf16.msra.mxu0 %v667
    %1074 = vmatprep.subr.bf16.mxu0 %v672
    %1075 = vmatpush1.bf16.msra.mxu0 %v671
    %1076 = vmatprep.subr.bf16.mxu0 0
    %1077 = vmatpush1.bf16.msra.mxu0 0
    %1078 = vmatprep.subr.bf16.mxu0 0
    %1079 = vmatpush1.bf16.msra.mxu0 0
    %1080 = vmatprep.subr.bf16.mxu0 0
    %1081 = vmatpush1.bf16.msra.mxu0 0
    %1082 = vmatprep.subr.bf16.mxu0 0
    %1083 = vmatpush1.bf16.msra.mxu0 0
    %1084 = vmatprep.subr.bf16.mxu0 0
    %1085 = vmatpush1.bf16.msra.mxu0 0
    %1086 = vmatprep.subr.bf16.mxu0 0
    %1087 = vmatpush1.bf16.msra.mxu0 0
    %1088 = vmatprep.subr.bf16.mxu0 0
    %1089 = vmatpush1.bf16.msra.mxu0 0
    %1090 = vmatprep.subr.bf16.mxu0 0
    %1091 = vmatpush1.bf16.msra.mxu0 0
    %1092 = vmatprep.mubr.bf16.mxu0 0
    %1093 = vmatmul.mubr.bf16.gmra.mrb[0].mxu0 %v1059
    %v1094 = vpop.f32.mrb[0].mxu0
    %v1095 = vadd.f32 0.0, %v1094
    %v1096 = vpop.f32.mrb[0].mxu0
    %v1097 = vadd.f32 0.0, %v1096
    %v1098 = vpop.f32.mrb[0].mxu0
    %v1099 = vpop.f32.mrb[0].mxu0
    %1100 = vdwg.mxu0
    %1101 = vmatprep.subr.bf16.mxu0 %v646
    %1102 = vmatpush1.bf16.msra.mxu0 %v645
    %1103 = vmatprep.subr.bf16.mxu0 %v650
    %1104 = vmatpush1.bf16.msra.mxu0 %v649
    %1105 = vmatprep.subr.bf16.mxu0 %v654
    %1106 = vmatpush1.bf16.msra.mxu0 %v653
    %1107 = vmatprep.subr.bf16.mxu0 %v658
    %1108 = vmatpush1.bf16.msra.mxu0 %v657
    %1109 = vmatprep.subr.bf16.mxu0 %v662
    %1110 = vmatpush1.bf16.msra.mxu0 %v661
    %1111 = vmatprep.subr.bf16.mxu0 %v666
    %1112 = vmatpush1.bf16.msra.mxu0 %v665
    %1113 = vmatprep.subr.bf16.mxu0 %v670
    %1114 = vmatpush1.bf16.msra.mxu0 %v669
    %1115 = vmatprep.subr.bf16.mxu0 %v674
    %1116 = vmatpush1.bf16.msra.mxu0 %v673
    %1117 = vmatprep.subr.bf16.mxu0 0
    %1118 = vmatpush1.bf16.msra.mxu0 0
    %1119 = vmatprep.subr.bf16.mxu0 0
    %1120 = vmatpush1.bf16.msra.mxu0 0
    %1121 = vmatprep.subr.bf16.mxu0 0
    %1122 = vmatpush1.bf16.msra.mxu0 0
    %1123 = vmatprep.subr.bf16.mxu0 0
    %1124 = vmatpush1.bf16.msra.mxu0 0
    %1125 = vmatprep.subr.bf16.mxu0 0
    %1126 = vmatpush1.bf16.msra.mxu0 0
    %1127 = vmatprep.subr.bf16.mxu0 0
    %1128 = vmatpush1.bf16.msra.mxu0 0
    %1129 = vmatprep.subr.bf16.mxu0 0
    %1130 = vmatpush1.bf16.msra.mxu0 0
    %1131 = vmatprep.subr.bf16.mxu0 0
    %1132 = vmatpush1.bf16.msra.mxu0 0
    %1133 = vmatprep.mubr.bf16.mxu0 0
    %1134 = vmatmul.mubr.bf16.gmra.mrb[0].mxu0 %v1059
    %v1135 = vpop.f32.mrb[0].mxu0
    %v1136 = vadd.f32 0.0, %v1135
    %v1137 = vpop.f32.mrb[0].mxu0
    %v1138 = vadd.f32 0.0, %v1137
    %v1139 = vpop.f32.mrb[0].mxu0
    %v1140 = vpop.f32.mrb[0].mxu0
    %1141 = vdwg.mxu0
    %v1142 = vadd.f32 %v1055, %v1095
    %v1143 = vadd.f32 %v1056, %v1097
    %v1144 = vadd.f32 %v1057, %v1136
    %v1145 = vadd.f32 %v1058, %v1138
    %v1146 = vxor.u32 %v1142, 2147483648
    %v1147 = vmul.f32 %v1146, 1.442695
    %v1148 = vpow.pop %v1147
    %v1149 = vadd.f32 %v1148, 1.0
    %v1150 = vrcp.pop %v1149
    %v1151 = vmul.f32 1.0, %v1150
    %v1152 = vxor.u32 %v1143, 2147483648
    %v1153 = vmul.f32 %v1152, 1.442695
    %v1154 = vpow.pop %v1153
    %v1155 = vadd.f32 %v1154, 1.0
    %v1156 = vrcp.pop %v1155
    %v1157 = vmul.f32 1.0, %v1156
    %v1158 = vtanh.pop %v1144
    %v1159 = vxor.u32 %v1145, 2147483648
    %v1160 = vmul.f32 %v1159, 1.442695
    %v1161 = vpow.pop %v1160
    %v1162 = vadd.f32 %v1161, 1.0
    %v1163 = vrcp.pop %v1162
    %v1164 = vmul.f32 1.0, %v1163
    %v1165 = vmul.f32 %v1157, %v1049
    %v1166 = vmul.f32 %v1151, %v1158
    %v1167 = vadd.f32 %v1165, %v1166
    %v1168 = vtanh.pop %v1167
    %v1169 = vmul.f32 %v1164, %v1168
    %s1170 = scalar_lea.vmem [#allocation3], 24
    %1171 = vst [vmem:[%s1170] sm:$0xff] %v1169
    %s1172 = scalar_lea.vmem [#allocation2], 128
    %v1173 = vld [vmem:[%s1172] sm:$0xff]
    %v1174 = vld [vmem:[%s1172 + $0x8] sm:$0xff]
    %v1175 = vld [vmem:[%s1172 + $0x10] sm:$0xff]
    %v1176 = vld [vmem:[%s1172 + $0x18] sm:$0xff]
    %v1177 = vpack.c.bf16 %v1169, %v1169
    %1178 = vmatprep.subr.bf16.mxu0 %v644
    %1179 = vmatpush1.bf16.msra.mxu0 %v643
    %1180 = vmatprep.subr.bf16.mxu0 %v648
    %1181 = vmatpush1.bf16.msra.mxu0 %v647
    %1182 = vmatprep.subr.bf16.mxu0 %v652
    %1183 = vmatpush1.bf16.msra.mxu0 %v651
    %1184 = vmatprep.subr.bf16.mxu0 %v656
    %1185 = vmatpush1.bf16.msra.mxu0 %v655
    %1186 = vmatprep.subr.bf16.mxu0 %v660
    %1187 = vmatpush1.bf16.msra.mxu0 %v659
    %1188 = vmatprep.subr.bf16.mxu0 %v664
    %1189 = vmatpush1.bf16.msra.mxu0 %v663
    %1190 = vmatprep.subr.bf16.mxu0 %v668
    %1191 = vmatpush1.bf16.msra.mxu0 %v667
    %1192 = vmatprep.subr.bf16.mxu0 %v672
    %1193 = vmatpush1.bf16.msra.mxu0 %v671
    %1194 = vmatprep.subr.bf16.mxu0 0
    %1195 = vmatpush1.bf16.msra.mxu0 0
    %1196 = vmatprep.subr.bf16.mxu0 0
    %1197 = vmatpush1.bf16.msra.mxu0 0
    %1198 = vmatprep.subr.bf16.mxu0 0
    %1199 = vmatpush1.bf16.msra.mxu0 0
    %1200 = vmatprep.subr.bf16.mxu0 0
    %1201 = vmatpush1.bf16.msra.mxu0 0
    %1202 = vmatprep.subr.bf16.mxu0 0
    %1203 = vmatpush1.bf16.msra.mxu0 0
    %1204 = vmatprep.subr.bf16.mxu0 0
    %1205 = vmatpush1.bf16.msra.mxu0 0
    %1206 = vmatprep.subr.bf16.mxu0 0
    %1207 = vmatpush1.bf16.msra.mxu0 0
    %1208 = vmatprep.subr.bf16.mxu0 0
    %1209 = vmatpush1.bf16.msra.mxu0 0
    %1210 = vmatprep.mubr.bf16.mxu0 0
    %1211 = vmatmul.mubr.bf16.gmra.mrb[0].mxu0 %v1177
    %v1212 = vpop.f32.mrb[0].mxu0
    %v1213 = vadd.f32 0.0, %v1212
    %v1214 = vpop.f32.mrb[0].mxu0
    %v1215 = vadd.f32 0.0, %v1214
    %v1216 = vpop.f32.mrb[0].mxu0
    %v1217 = vpop.f32.mrb[0].mxu0
    %1218 = vdwg.mxu0
    %1219 = vmatprep.subr.bf16.mxu0 %v646
    %1220 = vmatpush1.bf16.msra.mxu0 %v645
    %1221 = vmatprep.subr.bf16.mxu0 %v650
    %1222 = vmatpush1.bf16.msra.mxu0 %v649
    %1223 = vmatprep.subr.bf16.mxu0 %v654
    %1224 = vmatpush1.bf16.msra.mxu0 %v653
    %1225 = vmatprep.subr.bf16.mxu0 %v658
    %1226 = vmatpush1.bf16.msra.mxu0 %v657
    %1227 = vmatprep.subr.bf16.mxu0 %v662
    %1228 = vmatpush1.bf16.msra.mxu0 %v661
    %1229 = vmatprep.subr.bf16.mxu0 %v666
    %1230 = vmatpush1.bf16.msra.mxu0 %v665
    %1231 = vmatprep.subr.bf16.mxu0 %v670
    %1232 = vmatpush1.bf16.msra.mxu0 %v669
    %1233 = vmatprep.subr.bf16.mxu0 %v674
    %1234 = vmatpush1.bf16.msra.mxu0 %v673
    %1235 = vmatprep.subr.bf16.mxu0 0
    %1236 = vmatpush1.bf16.msra.mxu0 0
    %1237 = vmatprep.subr.bf16.mxu0 0
    %1238 = vmatpush1.bf16.msra.mxu0 0
    %1239 = vmatprep.subr.bf16.mxu0 0
    %1240 = vmatpush1.bf16.msra.mxu0 0
    %1241 = vmatprep.subr.bf16.mxu0 0
    %1242 = vmatpush1.bf16.msra.mxu0 0
    %1243 = vmatprep.subr.bf16.mxu0 0
    %1244 = vmatpush1.bf16.msra.mxu0 0
    %1245 = vmatprep.subr.bf16.mxu0 0
    %1246 = vmatpush1.bf16.msra.mxu0 0
    %1247 = vmatprep.subr.bf16.mxu0 0
    %1248 = vmatpush1.bf16.msra.mxu0 0
    %1249 = vmatprep.subr.bf16.mxu0 0
    %1250 = vmatpush1.bf16.msra.mxu0 0
    %1251 = vmatprep.mubr.bf16.mxu0 0
    %1252 = vmatmul.mubr.bf16.gmra.mrb[0].mxu0 %v1177
    %v1253 = vpop.f32.mrb[0].mxu0
    %v1254 = vadd.f32 0.0, %v1253
    %v1255 = vpop.f32.mrb[0].mxu0
    %v1256 = vadd.f32 0.0, %v1255
    %v1257 = vpop.f32.mrb[0].mxu0
    %v1258 = vpop.f32.mrb[0].mxu0
    %1259 = vdwg.mxu0
    %v1260 = vadd.f32 %v1173, %v1213
    %v1261 = vadd.f32 %v1174, %v1215
    %v1262 = vadd.f32 %v1175, %v1254
    %v1263 = vadd.f32 %v1176, %v1256
    %v1264 = vxor.u32 %v1260, 2147483648
    %v1265 = vmul.f32 %v1264, 1.442695
    %v1266 = vpow.pop %v1265
    %v1267 = vadd.f32 %v1266, 1.0
    %v1268 = vrcp.pop %v1267
    %v1269 = vmul.f32 1.0, %v1268
    %v1270 = vxor.u32 %v1261, 2147483648
    %v1271 = vmul.f32 %v1270, 1.442695
    %v1272 = vpow.pop %v1271
    %v1273 = vadd.f32 %v1272, 1.0
    %v1274 = vrcp.pop %v1273
    %v1275 = vmul.f32 1.0, %v1274
    %v1276 = vtanh.pop %v1262
    %v1277 = vxor.u32 %v1263, 2147483648
    %v1278 = vmul.f32 %v1277, 1.442695
    %v1279 = vpow.pop %v1278
    %v1280 = vadd.f32 %v1279, 1.0
    %v1281 = vrcp.pop %v1280
    %v1282 = vmul.f32 1.0, %v1281
    %v1283 = vmul.f32 %v1275, %v1167
    %v1284 = vmul.f32 %v1269, %v1276
    %v1285 = vadd.f32 %v1283, %v1284
    %v1286 = vtanh.pop %v1285
    %v1287 = vmul.f32 %v1282, %v1286
    %s1288 = scalar_lea.vmem [#allocation3], 32
    %1289 = vst [vmem:[%s1288] sm:$0xff] %v1287
    %s1290 = scalar_lea.vmem [#allocation2], 160
    %v1291 = vld [vmem:[%s1290] sm:$0xff]
    %v1292 = vld [vmem:[%s1290 + $0x8] sm:$0xff]
    %v1293 = vld [vmem:[%s1290 + $0x10] sm:$0xff]
    %v1294 = vld [vmem:[%s1290 + $0x18] sm:$0xff]
    %v1295 = vpack.c.bf16 %v1287, %v1287
    %1296 = vmatprep.subr.bf16.mxu0 %v644
    %1297 = vmatpush1.bf16.msra.mxu0 %v643
    %1298 = vmatprep.subr.bf16.mxu0 %v648
    %1299 = vmatpush1.bf16.msra.mxu0 %v647
    %1300 = vmatprep.subr.bf16.mxu0 %v652
    %1301 = vmatpush1.bf16.msra.mxu0 %v651
    %1302 = vmatprep.subr.bf16.mxu0 %v656
    %1303 = vmatpush1.bf16.msra.mxu0 %v655
    %1304 = vmatprep.subr.bf16.mxu0 %v660
    %1305 = vmatpush1.bf16.msra.mxu0 %v659
    %1306 = vmatprep.subr.bf16.mxu0 %v664
    %1307 = vmatpush1.bf16.msra.mxu0 %v663
    %1308 = vmatprep.subr.bf16.mxu0 %v668
    %1309 = vmatpush1.bf16.msra.mxu0 %v667
    %1310 = vmatprep.subr.bf16.mxu0 %v672
    %1311 = vmatpush1.bf16.msra.mxu0 %v671
    %1312 = vmatprep.subr.bf16.mxu0 0
    %1313 = vmatpush1.bf16.msra.mxu0 0
    %1314 = vmatprep.subr.bf16.mxu0 0
    %1315 = vmatpush1.bf16.msra.mxu0 0
    %1316 = vmatprep.subr.bf16.mxu0 0
    %1317 = vmatpush1.bf16.msra.mxu0 0
    %1318 = vmatprep.subr.bf16.mxu0 0
    %1319 = vmatpush1.bf16.msra.mxu0 0
    %1320 = vmatprep.subr.bf16.mxu0 0
    %1321 = vmatpush1.bf16.msra.mxu0 0
    %1322 = vmatprep.subr.bf16.mxu0 0
    %1323 = vmatpush1.bf16.msra.mxu0 0
    %1324 = vmatprep.subr.bf16.mxu0 0
    %1325 = vmatpush1.bf16.msra.mxu0 0
    %1326 = vmatprep.subr.bf16.mxu0 0
    %1327 = vmatpush1.bf16.msra.mxu0 0
    %1328 = vmatprep.mubr.bf16.mxu0 0
    %1329 = vmatmul.mubr.bf16.gmra.mrb[0].mxu0 %v1295
    %v1330 = vpop.f32.mrb[0].mxu0
    %v1331 = vadd.f32 0.0, %v1330
    %v1332 = vpop.f32.mrb[0].mxu0
    %v1333 = vadd.f32 0.0, %v1332
    %v1334 = vpop.f32.mrb[0].mxu0
    %v1335 = vpop.f32.mrb[0].mxu0
    %1336 = vdwg.mxu0
    %1337 = vmatprep.subr.bf16.mxu0 %v646
    %1338 = vmatpush1.bf16.msra.mxu0 %v645
    %1339 = vmatprep.subr.bf16.mxu0 %v650
    %1340 = vmatpush1.bf16.msra.mxu0 %v649
    %1341 = vmatprep.subr.bf16.mxu0 %v654
    %1342 = vmatpush1.bf16.msra.mxu0 %v653
    %1343 = vmatprep.subr.bf16.mxu0 %v658
    %1344 = vmatpush1.bf16.msra.mxu0 %v657
    %1345 = vmatprep.subr.bf16.mxu0 %v662
    %1346 = vmatpush1.bf16.msra.mxu0 %v661
    %1347 = vmatprep.subr.bf16.mxu0 %v666
    %1348 = vmatpush1.bf16.msra.mxu0 %v665
    %1349 = vmatprep.subr.bf16.mxu0 %v670
    %1350 = vmatpush1.bf16.msra.mxu0 %v669
    %1351 = vmatprep.subr.bf16.mxu0 %v674
    %1352 = vmatpush1.bf16.msra.mxu0 %v673
    %1353 = vmatprep.subr.bf16.mxu0 0
    %1354 = vmatpush1.bf16.msra.mxu0 0
    %1355 = vmatprep.subr.bf16.mxu0 0
    %1356 = vmatpush1.bf16.msra.mxu0 0
    %1357 = vmatprep.subr.bf16.mxu0 0
    %1358 = vmatpush1.bf16.msra.mxu0 0
    %1359 = vmatprep.subr.bf16.mxu0 0
    %1360 = vmatpush1.bf16.msra.mxu0 0
    %1361 = vmatprep.subr.bf16.mxu0 0
    %1362 = vmatpush1.bf16.msra.mxu0 0
    %1363 = vmatprep.subr.bf16.mxu0 0
    %1364 = vmatpush1.bf16.msra.mxu0 0
    %1365 = vmatprep.subr.bf16.mxu0 0
    %1366 = vmatpush1.bf16.msra.mxu0 0
    %1367 = vmatprep.subr.bf16.mxu0 0
    %1368 = vmatpush1.bf16.msra.mxu0 0
    %1369 = vmatprep.mubr.bf16.mxu0 0
    %1370 = vmatmul.mubr.bf16.gmra.mrb[0].mxu0 %v1295
    %v1371 = vpop.f32.mrb[0].mxu0
    %v1372 = vadd.f32 0.0, %v1371
    %v1373 = vpop.f32.mrb[0].mxu0
    %v1374 = vadd.f32 0.0, %v1373
    %v1375 = vpop.f32.mrb[0].mxu0
    %v1376 = vpop.f32.mrb[0].mxu0
    %1377 = vdwg.mxu0
    %v1378 = vadd.f32 %v1291, %v1331
    %v1379 = vadd.f32 %v1292, %v1333
    %v1380 = vadd.f32 %v1293, %v1372
    %v1381 = vadd.f32 %v1294, %v1374
    %v1382 = vxor.u32 %v1378, 2147483648
    %v1383 = vmul.f32 %v1382, 1.442695
    %v1384 = vpow.pop %v1383
    %v1385 = vadd.f32 %v1384, 1.0
    %v1386 = vrcp.pop %v1385
    %v1387 = vmul.f32 1.0, %v1386
    %v1388 = vxor.u32 %v1379, 2147483648
    %v1389 = vmul.f32 %v1388, 1.442695
    %v1390 = vpow.pop %v1389
    %v1391 = vadd.f32 %v1390, 1.0
    %v1392 = vrcp.pop %v1391
    %v1393 = vmul.f32 1.0, %v1392
    %v1394 = vtanh.pop %v1380
    %v1395 = vxor.u32 %v1381, 2147483648
    %v1396 = vmul.f32 %v1395, 1.442695
    %v1397 = vpow.pop %v1396
    %v1398 = vadd.f32 %v1397, 1.0
    %v1399 = vrcp.pop %v1398
    %v1400 = vmul.f32 1.0, %v1399
    %v1401 = vmul.f32 %v1393, %v1285
    %v1402 = vmul.f32 %v1387, %v1394
    %v1403 = vadd.f32 %v1401, %v1402
    %v1404 = vtanh.pop %v1403
    %v1405 = vmul.f32 %v1400, %v1404
    %s1406 = scalar_lea.vmem [#allocation3], 40
    %1407 = vst [vmem:[%s1406] sm:$0xff] %v1405
    %s1408 = scalar_lea.vmem [#allocation2], 192
    %v1409 = vld [vmem:[%s1408] sm:$0xff]
    %v1410 = vld [vmem:[%s1408 + $0x8] sm:$0xff]
    %v1411 = vld [vmem:[%s1408 + $0x10] sm:$0xff]
    %v1412 = vld [vmem:[%s1408 + $0x18] sm:$0xff]
    %v1413 = vpack.c.bf16 %v1405, %v1405
    %1414 = vmatprep.subr.bf16.mxu0 %v644
    %1415 = vmatpush1.bf16.msra.mxu0 %v643
    %1416 = vmatprep.subr.bf16.mxu0 %v648
    %1417 = vmatpush1.bf16.msra.mxu0 %v647
    %1418 = vmatprep.subr.bf16.mxu0 %v652
    %1419 = vmatpush1.bf16.msra.mxu0 %v651
    %1420 = vmatprep.subr.bf16.mxu0 %v656
    %1421 = vmatpush1.bf16.msra.mxu0 %v655
    %1422 = vmatprep.subr.bf16.mxu0 %v660
    %1423 = vmatpush1.bf16.msra.mxu0 %v659
    %1424 = vmatprep.subr.bf16.mxu0 %v664
    %1425 = vmatpush1.bf16.msra.mxu0 %v663
    %1426 = vmatprep.subr.bf16.mxu0 %v668
    %1427 = vmatpush1.bf16.msra.mxu0 %v667
    %1428 = vmatprep.subr.bf16.mxu0 %v672
    %1429 = vmatpush1.bf16.msra.mxu0 %v671
    %1430 = vmatprep.subr.bf16.mxu0 0
    %1431 = vmatpush1.bf16.msra.mxu0 0
    %1432 = vmatprep.subr.bf16.mxu0 0
    %1433 = vmatpush1.bf16.msra.mxu0 0
    %1434 = vmatprep.subr.bf16.mxu0 0
    %1435 = vmatpush1.bf16.msra.mxu0 0
    %1436 = vmatprep.subr.bf16.mxu0 0
    %1437 = vmatpush1.bf16.msra.mxu0 0
    %1438 = vmatprep.subr.bf16.mxu0 0
    %1439 = vmatpush1.bf16.msra.mxu0 0
    %1440 = vmatprep.subr.bf16.mxu0 0
    %1441 = vmatpush1.bf16.msra.mxu0 0
    %1442 = vmatprep.subr.bf16.mxu0 0
    %1443 = vmatpush1.bf16.msra.mxu0 0
    %1444 = vmatprep.subr.bf16.mxu0 0
    %1445 = vmatpush1.bf16.msra.mxu0 0
    %1446 = vmatprep.mubr.bf16.mxu0 0
    %1447 = vmatmul.mubr.bf16.gmra.mrb[0].mxu0 %v1413
    %v1448 = vpop.f32.mrb[0].mxu0
    %v1449 = vadd.f32 0.0, %v1448
    %v1450 = vpop.f32.mrb[0].mxu0
    %v1451 = vadd.f32 0.0, %v1450
    %v1452 = vpop.f32.mrb[0].mxu0
    %v1453 = vpop.f32.mrb[0].mxu0
    %1454 = vdwg.mxu0
    %1455 = vmatprep.subr.bf16.mxu0 %v646
    %1456 = vmatpush1.bf16.msra.mxu0 %v645
    %1457 = vmatprep.subr.bf16.mxu0 %v650
    %1458 = vmatpush1.bf16.msra.mxu0 %v649
    %1459 = vmatprep.subr.bf16.mxu0 %v654
    %1460 = vmatpush1.bf16.msra.mxu0 %v653
    %1461 = vmatprep.subr.bf16.mxu0 %v658
    %1462 = vmatpush1.bf16.msra.mxu0 %v657
    %1463 = vmatprep.subr.bf16.mxu0 %v662
    %1464 = vmatpush1.bf16.msra.mxu0 %v661
    %1465 = vmatprep.subr.bf16.mxu0 %v666
    %1466 = vmatpush1.bf16.msra.mxu0 %v665
    %1467 = vmatprep.subr.bf16.mxu0 %v670
    %1468 = vmatpush1.bf16.msra.mxu0 %v669
    %1469 = vmatprep.subr.bf16.mxu0 %v674
    %1470 = vmatpush1.bf16.msra.mxu0 %v673
    %1471 = vmatprep.subr.bf16.mxu0 0
    %1472 = vmatpush1.bf16.msra.mxu0 0
    %1473 = vmatprep.subr.bf16.mxu0 0
    %1474 = vmatpush1.bf16.msra.mxu0 0
    %1475 = vmatprep.subr.bf16.mxu0 0
    %1476 = vmatpush1.bf16.msra.mxu0 0
    %1477 = vmatprep.subr.bf16.mxu0 0
    %1478 = vmatpush1.bf16.msra.mxu0 0
    %1479 = vmatprep.subr.bf16.mxu0 0
    %1480 = vmatpush1.bf16.msra.mxu0 0
    %1481 = vmatprep.subr.bf16.mxu0 0
    %1482 = vmatpush1.bf16.msra.mxu0 0
    %1483 = vmatprep.subr.bf16.mxu0 0
    %1484 = vmatpush1.bf16.msra.mxu0 0
    %1485 = vmatprep.subr.bf16.mxu0 0
    %1486 = vmatpush1.bf16.msra.mxu0 0
    %1487 = vmatprep.mubr.bf16.mxu0 0
    %1488 = vmatmul.mubr.bf16.gmra.mrb[0].mxu0 %v1413
    %v1489 = vpop.f32.mrb[0].mxu0
    %v1490 = vadd.f32 0.0, %v1489
    %v1491 = vpop.f32.mrb[0].mxu0
    %v1492 = vadd.f32 0.0, %v1491
    %v1493 = vpop.f32.mrb[0].mxu0
    %v1494 = vpop.f32.mrb[0].mxu0
    %1495 = vdwg.mxu0
    %v1496 = vadd.f32 %v1409, %v1449
    %v1497 = vadd.f32 %v1410, %v1451
    %v1498 = vadd.f32 %v1411, %v1490
    %v1499 = vadd.f32 %v1412, %v1492
    %v1500 = vxor.u32 %v1496, 2147483648
    %v1501 = vmul.f32 %v1500, 1.442695
    %v1502 = vpow.pop %v1501
    %v1503 = vadd.f32 %v1502, 1.0
    %v1504 = vrcp.pop %v1503
    %v1505 = vmul.f32 1.0, %v1504
    %v1506 = vxor.u32 %v1497, 2147483648
    %v1507 = vmul.f32 %v1506, 1.442695
    %v1508 = vpow.pop %v1507
    %v1509 = vadd.f32 %v1508, 1.0
    %v1510 = vrcp.pop %v1509
    %v1511 = vmul.f32 1.0, %v1510
    %v1512 = vtanh.pop %v1498
    %v1513 = vxor.u32 %v1499, 2147483648
    %v1514 = vmul.f32 %v1513, 1.442695
    %v1515 = vpow.pop %v1514
    %v1516 = vadd.f32 %v1515, 1.0
    %v1517 = vrcp.pop %v1516
    %v1518 = vmul.f32 1.0, %v1517
    %v1519 = vmul.f32 %v1511, %v1403
    %v1520 = vmul.f32 %v1505, %v1512
    %v1521 = vadd.f32 %v1519, %v1520
    %v1522 = vtanh.pop %v1521
    %v1523 = vmul.f32 %v1518, %v1522
    %s1524 = scalar_lea.vmem [#allocation3], 48
    %1525 = vst [vmem:[%s1524] sm:$0xff] %v1523
    %s1526 = scalar_lea.vmem [#allocation2], 224
    %v1527 = vld [vmem:[%s1526] sm:$0xff]
    %v1528 = vld [vmem:[%s1526 + $0x8] sm:$0xff]
    %v1529 = vld [vmem:[%s1526 + $0x10] sm:$0xff]
    %v1530 = vld [vmem:[%s1526 + $0x18] sm:$0xff]
    %v1531 = vpack.c.bf16 %v1523, %v1523
    %1532 = vmatprep.subr.bf16.mxu0 %v644
    %1533 = vmatpush1.bf16.msra.mxu0 %v643
    %1534 = vmatprep.subr.bf16.mxu0 %v648
    %1535 = vmatpush1.bf16.msra.mxu0 %v647
    %1536 = vmatprep.subr.bf16.mxu0 %v652
    %1537 = vmatpush1.bf16.msra.mxu0 %v651
    %1538 = vmatprep.subr.bf16.mxu0 %v656
    %1539 = vmatpush1.bf16.msra.mxu0 %v655
    %1540 = vmatprep.subr.bf16.mxu0 %v660
    %1541 = vmatpush1.bf16.msra.mxu0 %v659
    %1542 = vmatprep.subr.bf16.mxu0 %v664
    %1543 = vmatpush1.bf16.msra.mxu0 %v663
    %1544 = vmatprep.subr.bf16.mxu0 %v668
    %1545 = vmatpush1.bf16.msra.mxu0 %v667
    %1546 = vmatprep.subr.bf16.mxu0 %v672
    %1547 = vmatpush1.bf16.msra.mxu0 %v671
    %1548 = vmatprep.subr.bf16.mxu0 0
    %1549 = vmatpush1.bf16.msra.mxu0 0
    %1550 = vmatprep.subr.bf16.mxu0 0
    %1551 = vmatpush1.bf16.msra.mxu0 0
    %1552 = vmatprep.subr.bf16.mxu0 0
    %1553 = vmatpush1.bf16.msra.mxu0 0
    %1554 = vmatprep.subr.bf16.mxu0 0
    %1555 = vmatpush1.bf16.msra.mxu0 0
    %1556 = vmatprep.subr.bf16.mxu0 0
    %1557 = vmatpush1.bf16.msra.mxu0 0
    %1558 = vmatprep.subr.bf16.mxu0 0
    %1559 = vmatpush1.bf16.msra.mxu0 0
    %1560 = vmatprep.subr.bf16.mxu0 0
    %1561 = vmatpush1.bf16.msra.mxu0 0
    %1562 = vmatprep.subr.bf16.mxu0 0
    %1563 = vmatpush1.bf16.msra.mxu0 0
    %1564 = vmatprep.mubr.bf16.mxu0 0
    %1565 = vmatmul.mubr.bf16.gmra.mrb[0].mxu0 %v1531
    %v1566 = vpop.f32.mrb[0].mxu0
    %v1567 = vadd.f32 0.0, %v1566
    %v1568 = vpop.f32.mrb[0].mxu0
    %v1569 = vadd.f32 0.0, %v1568
    %v1570 = vpop.f32.mrb[0].mxu0
    %v1571 = vpop.f32.mrb[0].mxu0
    %1572 = vdwg.mxu0
    %1573 = vmatprep.subr.bf16.mxu0 %v646
    %1574 = vmatpush1.bf16.msra.mxu0 %v645
    %1575 = vmatprep.subr.bf16.mxu0 %v650
    %1576 = vmatpush1.bf16.msra.mxu0 %v649
    %1577 = vmatprep.subr.bf16.mxu0 %v654
    %1578 = vmatpush1.bf16.msra.mxu0 %v653
    %1579 = vmatprep.subr.bf16.mxu0 %v658
    %1580 = vmatpush1.bf16.msra.mxu0 %v657
    %1581 = vmatprep.subr.bf16.mxu0 %v662
    %1582 = vmatpush1.bf16.msra.mxu0 %v661
    %1583 = vmatprep.subr.bf16.mxu0 %v666
    %1584 = vmatpush1.bf16.msra.mxu0 %v665
    %1585 = vmatprep.subr.bf16.mxu0 %v670
    %1586 = vmatpush1.bf16.msra.mxu0 %v669
    %1587 = vmatprep.subr.bf16.mxu0 %v674
    %1588 = vmatpush1.bf16.msra.mxu0 %v673
    %1589 = vmatprep.subr.bf16.mxu0 0
    %1590 = vmatpush1.bf16.msra.mxu0 0
    %1591 = vmatprep.subr.bf16.mxu0 0
    %1592 = vmatpush1.bf16.msra.mxu0 0
    %1593 = vmatprep.subr.bf16.mxu0 0
    %1594 = vmatpush1.bf16.msra.mxu0 0
    %1595 = vmatprep.subr.bf16.mxu0 0
    %1596 = vmatpush1.bf16.msra.mxu0 0
    %1597 = vmatprep.subr.bf16.mxu0 0
    %1598 = vmatpush1.bf16.msra.mxu0 0
    %1599 = vmatprep.subr.bf16.mxu0 0
    %1600 = vmatpush1.bf16.msra.mxu0 0
    %1601 = vmatprep.subr.bf16.mxu0 0
    %1602 = vmatpush1.bf16.msra.mxu0 0
    %1603 = vmatprep.subr.bf16.mxu0 0
    %1604 = vmatpush1.bf16.msra.mxu0 0
    %1605 = vmatprep.mubr.bf16.mxu0 0
    %1606 = vmatmul.mubr.bf16.gmra.mrb[0].mxu0 %v1531
    %v1607 = vpop.f32.mrb[0].mxu0
    %v1608 = vadd.f32 0.0, %v1607
    %v1609 = vpop.f32.mrb[0].mxu0
    %v1610 = vadd.f32 0.0, %v1609
    %v1611 = vpop.f32.mrb[0].mxu0
    %v1612 = vpop.f32.mrb[0].mxu0
    %1613 = vdwg.mxu0
    %v1614 = vadd.f32 %v1527, %v1567
    %v1615 = vadd.f32 %v1528, %v1569
    %v1616 = vadd.f32 %v1529, %v1608
    %v1617 = vadd.f32 %v1530, %v1610
    %v1618 = vxor.u32 %v1614, 2147483648
    %v1619 = vmul.f32 %v1618, 1.442695
    %v1620 = vpow.pop %v1619
    %v1621 = vadd.f32 %v1620, 1.0
    %v1622 = vrcp.pop %v1621
    %v1623 = vmul.f32 1.0, %v1622
    %v1624 = vxor.u32 %v1615, 2147483648
    %v1625 = vmul.f32 %v1624, 1.442695
    %v1626 = vpow.pop %v1625
    %v1627 = vadd.f32 %v1626, 1.0
    %v1628 = vrcp.pop %v1627
    %v1629 = vmul.f32 1.0, %v1628
    %v1630 = vtanh.pop %v1616
    %v1631 = vxor.u32 %v1617, 2147483648
    %v1632 = vmul.f32 %v1631, 1.442695
    %v1633 = vpow.pop %v1632
    %v1634 = vadd.f32 %v1633, 1.0
    %v1635 = vrcp.pop %v1634
    %v1636 = vmul.f32 1.0, %v1635
    %v1637 = vmul.f32 %v1629, %v1521
    %v1638 = vmul.f32 %v1623, %v1630
    %v1639 = vadd.f32 %v1637, %v1638
    %v1640 = vtanh.pop %v1639
    %v1641 = vmul.f32 %v1636, %v1640
    %s1642 = scalar_lea.vmem [#allocation3], 56
    %1643 = vst [vmem:[%s1642] sm:$0xff] %v1641
    %1644 = vst [vmem:[#allocation4] sm:$0xff] %v1641
    %1645 = vst [vmem:[#allocation5] sm:$0xff] %v1639
    %v1646 = vld [vmem:[%s5] sm:$0x1]
    %v1647 = vld [vmem:[#allocation3] sm:$0xff]
    %v1648 = vld [vmem:[#allocation3 + $0x8] sm:$0xff]
    %v1649 = vld [vmem:[#allocation3 + $0x10] sm:$0xff]
    %v1650 = vld [vmem:[#allocation3 + $0x18] sm:$0xff]
    %v1651 = vld [vmem:[#allocation3 + $0x20] sm:$0xff]
    %v1652 = vld [vmem:[#allocation3 + $0x28] sm:$0xff]
    %v1653 = vld [vmem:[#allocation3 + $0x30] sm:$0xff]
    %v1654 = vld [vmem:[#allocation3 + $0x38] sm:$0xff]
    %v1656 = vlaneseq
    %v1657 = vshrl.u32 %v1656, 7
    %v1658 = vsub.s32 0, %v1657
    %v1659 = vrot.slane %v1646, %v1658
    %v1661 = vmul.f32 %v1647, %v1659
    %v1662 = vmul.f32 %v1648, %v1659
    %v1663 = vmul.f32 %v1649, %v1659
    %v1664 = vmul.f32 %v1650, %v1659
    %v1665 = vmul.f32 %v1651, %v1659
    %v1666 = vmul.f32 %v1652, %v1659
    %v1667 = vmul.f32 %v1653, %v1659
    %v1668 = vmul.f32 %v1654, %v1659
    %1669 = vadd.xlane.f32.xlu0 %v1661
    %v1670 = vpop.xlane.xlu0 %1669
    %1671 = vadd.xlane.f32.xlu0 %v1662
    %v1672 = vpop.xlane.xlu0 %1671
    %1673 = vadd.xlane.f32.xlu0 %v1663
    %v1674 = vpop.xlane.xlu0 %1673
    %1675 = vadd.xlane.f32.xlu0 %v1664
    %v1676 = vpop.xlane.xlu0 %1675
    %1677 = vadd.xlane.f32.xlu0 %v1665
    %v1678 = vpop.xlane.xlu0 %1677
    %1679 = vadd.xlane.f32.xlu0 %v1666
    %v1680 = vpop.xlane.xlu0 %1679
    %1681 = vadd.xlane.f32.xlu0 %v1667
    %v1682 = vpop.xlane.xlu0 %1681
    %1683 = vadd.xlane.f32.xlu0 %v1668
    %v1684 = vpop.xlane.xlu0 %1683
    %v1685 = vld [vmem:[#allocation9] sm:$0xff]
    %v1687 = vlaneseq
    %v1688 = vshrl.u32 %v1687, 7
    %v1689 = vsub.s32 0, %v1688
    %v1690 = vrot.slane %v1685, %v1689
    %1692 = vbcast.lane.b32.xlu0 %v1690, 256
    %v1693 = vpop.permute.xlu0 %1692
    %v1694 = vlaneseq
    %v1695 = vshrl.u32 %v1694, 7
    %v1696 = vsub.s32 1, %v1695
    %v1697 = vrot.slane %v1685, %v1696
    %1699 = vbcast.lane.b32.xlu0 %v1697, 256
    %v1700 = vpop.permute.xlu0 %1699
    %v1701 = vlaneseq
    %v1702 = vshrl.u32 %v1701, 7
    %v1703 = vsub.s32 2, %v1702
    %v1704 = vrot.slane %v1685, %v1703
    %1706 = vbcast.lane.b32.xlu0 %v1704, 256
    %v1707 = vpop.permute.xlu0 %1706
    %v1708 = vlaneseq
    %v1709 = vshrl.u32 %v1708, 7
    %v1710 = vsub.s32 3, %v1709
    %v1711 = vrot.slane %v1685, %v1710
    %1713 = vbcast.lane.b32.xlu0 %v1711, 256
    %v1714 = vpop.permute.xlu0 %1713
    %v1715 = vlaneseq
    %v1716 = vshrl.u32 %v1715, 7
    %v1717 = vsub.s32 4, %v1716
    %v1718 = vrot.slane %v1685, %v1717
    %1720 = vbcast.lane.b32.xlu0 %v1718, 256
    %v1721 = vpop.permute.xlu0 %1720
    %v1722 = vlaneseq
    %v1723 = vshrl.u32 %v1722, 7
    %v1724 = vsub.s32 5, %v1723
    %v1725 = vrot.slane %v1685, %v1724
    %1727 = vbcast.lane.b32.xlu0 %v1725, 256
    %v1728 = vpop.permute.xlu0 %1727
    %v1729 = vlaneseq
    %v1730 = vshrl.u32 %v1729, 7
    %v1731 = vsub.s32 6, %v1730
    %v1732 = vrot.slane %v1685, %v1731
    %1734 = vbcast.lane.b32.xlu0 %v1732, 256
    %v1735 = vpop.permute.xlu0 %1734
    %v1736 = vlaneseq
    %v1737 = vshrl.u32 %v1736, 7
    %v1738 = vsub.s32 7, %v1737
    %v1739 = vrot.slane %v1685, %v1738
    %1741 = vbcast.lane.b32.xlu0 %v1739, 256
    %v1742 = vpop.permute.xlu0 %1741
    %v1751 = vadd.f32 %v1670, %v1693
    %v1752 = vadd.f32 %v1672, %v1700
    %v1753 = vadd.f32 %v1674, %v1707
    %v1754 = vadd.f32 %v1676, %v1714
    %v1755 = vadd.f32 %v1678, %v1721
    %v1756 = vadd.f32 %v1680, %v1728
    %v1757 = vadd.f32 %v1682, %v1735
    %v1758 = vadd.f32 %v1684, %v1742
    %v1759 = vxor.u32 %v1751, 2147483648
    %v1760 = vxor.u32 %v1752, 2147483648
    %v1761 = vxor.u32 %v1753, 2147483648
    %v1762 = vxor.u32 %v1754, 2147483648
    %v1763 = vxor.u32 %v1755, 2147483648
    %v1764 = vxor.u32 %v1756, 2147483648
    %v1765 = vxor.u32 %v1757, 2147483648
    %v1766 = vxor.u32 %v1758, 2147483648
    %v1767 = vmul.f32 %v1759, 1.442695
    %v1768 = vpow.pop %v1767
    %v1769 = vmul.f32 %v1760, 1.442695
    %v1770 = vpow.pop %v1769
    %v1771 = vmul.f32 %v1761, 1.442695
    %v1772 = vpow.pop %v1771
    %v1773 = vmul.f32 %v1762, 1.442695
    %v1774 = vpow.pop %v1773
    %v1775 = vmul.f32 %v1763, 1.442695
    %v1776 = vpow.pop %v1775
    %v1777 = vmul.f32 %v1764, 1.442695
    %v1778 = vpow.pop %v1777
    %v1779 = vmul.f32 %v1765, 1.442695
    %v1780 = vpow.pop %v1779
    %v1781 = vmul.f32 %v1766, 1.442695
    %v1782 = vpow.pop %v1781
    %v1783 = vadd.f32 %v1768, 1.0
    %v1784 = vadd.f32 %v1770, 1.0
    %v1785 = vadd.f32 %v1772, 1.0
    %v1786 = vadd.f32 %v1774, 1.0
    %v1787 = vadd.f32 %v1776, 1.0
    %v1788 = vadd.f32 %v1778, 1.0
    %v1789 = vadd.f32 %v1780, 1.0
    %v1790 = vadd.f32 %v1782, 1.0
    %v1791 = vrcp.pop %v1783
    %v1792 = vmul.f32 1.0, %v1791
    %v1793 = vrcp.pop %v1784
    %v1794 = vmul.f32 1.0, %v1793
    %v1795 = vrcp.pop %v1785
    %v1796 = vmul.f32 1.0, %v1795
    %v1797 = vrcp.pop %v1786
    %v1798 = vmul.f32 1.0, %v1797
    %v1799 = vrcp.pop %v1787
    %v1800 = vmul.f32 1.0, %v1799
    %v1801 = vrcp.pop %v1788
    %v1802 = vmul.f32 1.0, %v1801
    %v1803 = vrcp.pop %v1789
    %v1804 = vmul.f32 1.0, %v1803
    %v1805 = vrcp.pop %v1790
    %v1806 = vmul.f32 1.0, %v1805
    %1815 = vset.pattern.permute.xlu0 0
    %1816 = vperm.xlu0 %1815, %v1792
    %v1817 = vpop.permute.xlu0 %1816
    %1818 = vset.pattern.permute.xlu0 0
    %1819 = vperm.xlu0 %1818, %v1794
    %v1820 = vpop.permute.xlu0 %1819
    %1821 = vset.pattern.permute.xlu0 0
    %1822 = vperm.xlu0 %1821, %v1796
    %v1823 = vpop.permute.xlu0 %1822
    %1824 = vset.pattern.permute.xlu0 0
    %1825 = vperm.xlu0 %1824, %v1798
    %v1826 = vpop.permute.xlu0 %1825
    %1827 = vset.pattern.permute.xlu0 0
    %1828 = vperm.xlu0 %1827, %v1800
    %v1829 = vpop.permute.xlu0 %1828
    %1830 = vset.pattern.permute.xlu0 0
    %1831 = vperm.xlu0 %1830, %v1802
    %v1832 = vpop.permute.xlu0 %1831
    %1833 = vset.pattern.permute.xlu0 0
    %1834 = vperm.xlu0 %1833, %v1804
    %v1835 = vpop.permute.xlu0 %1834
    %1836 = vset.pattern.permute.xlu0 0
    %1837 = vperm.xlu0 %1836, %v1806
    %v1838 = vpop.permute.xlu0 %1837
    %v1839 = vlaneseq
    %v1840 = vand.u32 %v1839, 127
    %v1841 = vlaneseq
    %v1842 = vshrl.u32 %v1841, 7
    %v1843 = vsub.s32 %v1840, %v1842
    %v1844 = vrot.slane %v1817, %v1843
    %v1845 = vlaneseq
    %v1846 = vshrl.u32 %v1845, 7
    %v1847 = vsub.s32 %v1840, %v1846
    %v1848 = vrot.slane %v1820, %v1847
    %v1849 = vlaneseq
    %v1850 = vshrl.u32 %v1849, 7
    %v1851 = vsub.s32 %v1840, %v1850
    %v1852 = vrot.slane %v1823, %v1851
    %v1853 = vlaneseq
    %v1854 = vshrl.u32 %v1853, 7
    %v1855 = vsub.s32 %v1840, %v1854
    %v1856 = vrot.slane %v1826, %v1855
    %v1857 = vlaneseq
    %v1858 = vshrl.u32 %v1857, 7
    %v1859 = vsub.s32 %v1840, %v1858
    %v1860 = vrot.slane %v1829, %v1859
    %v1861 = vlaneseq
    %v1862 = vshrl.u32 %v1861, 7
    %v1863 = vsub.s32 %v1840, %v1862
    %v1864 = vrot.slane %v1832, %v1863
    %v1865 = vlaneseq
    %v1866 = vshrl.u32 %v1865, 7
    %v1867 = vsub.s32 %v1840, %v1866
    %v1868 = vrot.slane %v1835, %v1867
    %v1869 = vlaneseq
    %v1870 = vshrl.u32 %v1869, 7
    %v1871 = vsub.s32 %v1840, %v1870
    %v1872 = vrot.slane %v1838, %v1871
    %vm1873 = vcmask 1041409
    %v1874 = vsel %vm1873, %v1848, %v1844
    %vm1875 = vcmask 1042434
    %v1876 = vsel %vm1875, %v1852, %v1874
    %vm1877 = vcmask 1043459
    %v1878 = vsel %vm1877, %v1856, %v1876
    %vm1879 = vcmask 1044484
    %v1880 = vsel %vm1879, %v1860, %v1878
    %vm1881 = vcmask 1045509
    %v1882 = vsel %vm1881, %v1864, %v1880
    %vm1883 = vcmask 1046534
    %v1884 = vsel %vm1883, %v1868, %v1882
    %vm1885 = vcmask 1047559
    %v1886 = vsel %vm1885, %v1872, %v1884
    %vm1888 = vcmask 64512
    %1889 = vst.msk [vmem:[#allocation14] sm:$0xff] %vm1888, %v1886
    // Predicated region
    $region46: #{tpu_custom_call.1} parent=1 // pred_check
      _
    $region47: #{tpu_custom_call.1} parent=1 // pred_check_branch
      %1891 = sbr.rel (0) target = $region49
    $region48: #{tpu_custom_call.1} parent=1 // pred_region
      %s1893 = ssub.s32 128, 128
      %1894 = vsyncadd [#allocation8], %s1893
      %s1896 = sshll.u32 [#allocation14], 4
      %s1897 = int_to_ptr.vmem [resolvable:$true] %s1896
      %1899 = dma.vmem_to_hbm [thread:$0]  %s1897, 128, %s6, [#allocation8]
    $region49: #{tpu_custom_call.1} parent=1 // pred_fallthru
      _
    // Predicated region
    $region50: #{tpu_custom_call.1} parent=1 // pred_check
      _
    $region51: #{tpu_custom_call.1} parent=1 // pred_check_branch
      %1901 = sbr.rel (0) target = $region53
    $region52: #{tpu_custom_call.1} parent=1 // pred_region
      %1902 = dma.done [#allocation8], 128
    $region53: #{tpu_custom_call.1} parent=1 // pred_fallthru
      _
    %1903 = vsyncpa [#allocation7], 1
    %1904 = vsyncpa [#allocation10], 1
    %1905 = vsyncpa [#allocation13], 1
    %1906 = vsyncpa [#allocation8], 1

</llo_original>
